<compile_context>
chip_gen: v7x
topology: tpu7x:2x2x1
jax: 0.10.0
libtpu: 0.0.40
codegen_flags: <defaults>
</compile_context>

<pallas_src>
import functools

import jax
import jax.numpy as jnp
from jax import lax
from jax.experimental import pallas as pl
from jax.experimental.pallas import tpu as pltpu


def _mha_kernel(xq_ref, xkv_ref, wqkv_ref, wo_ref, bo_ref, o_ref, *, heads):
    """One (batch, query-tile) grid step.

    xq_ref   : (TQ, D)          query-tile tokens (compute dtype, e.g. bf16)
    xkv_ref  : (N,  D)          full-sequence tokens for K/V projection
    wqkv_ref : (3*heads, D, hd) head-major pre-transposed QKV weight
                                (scale already folded into the Q part)
    wo_ref   : (heads, hd, D)   head-major pre-transposed output weight
    bo_ref   : (1, D) f32       output bias
    o_ref    : (TQ, D)          output tokens
    """
    f32 = jnp.float32
    xq = xq_ref[...]                     # (TQ, D), compute dtype
    xkv = xkv_ref[...]                   # (N, D)
    wqkv = wqkv_ref[...]                 # (3*heads, D, hd)
    TQ, D = xq.shape
    N = xkv.shape[0]
    cdt = xq.dtype

    # ---- QKV projection, heads-batched (no weight transpose, no lane slicing) ----
    xq_b = jnp.broadcast_to(xq[None, :, :], (heads, TQ, D))
    q3 = lax.dot_general(                # (heads, TQ, hd); softmax scale pre-folded
        xq_b, wqkv[:heads],
        dimension_numbers=(((2,), (1,)), ((0,), (0,))),
        preferred_element_type=f32)

    xkv_b = jnp.broadcast_to(xkv[None, :, :], (2 * heads, N, D))
    kv3 = lax.dot_general(               # (2*heads, N, hd)
        xkv_b, wqkv[heads:],
        dimension_numbers=(((2,), (1,)), ((0,), (0,))),
        preferred_element_type=f32)
    k3 = kv3[:heads]                     # (heads, N, hd)
    v3 = kv3[heads:]                     # (heads, N, hd)

    # ---- scaled dot-product scores + softmax (f32 math) ----
    s = lax.dot_general(                 # (heads, TQ, N)
        q3.astype(cdt), k3.astype(cdt),
        dimension_numbers=(((2,), (2,)), ((0,), (0,))),
        preferred_element_type=f32)
    s_max = jnp.max(s, axis=-1, keepdims=True)
    p = jnp.exp(s - s_max)
    p = p * pl.reciprocal(jnp.sum(p, axis=-1, keepdims=True), approx=True)

    # ---- attention @ V ----
    o_h = lax.dot_general(               # (heads, TQ, hd)
        p.astype(cdt), v3.astype(cdt),
        dimension_numbers=(((2,), (1,)), ((0,), (0,))),
        preferred_element_type=f32)

    # ---- output projection: per-head matmul + sum over heads (no lane concat) ----
    o_p = lax.dot_general(               # (heads, TQ, D)
        o_h.astype(cdt), wo_ref[...],
        dimension_numbers=(((2,), (1,)), ((0,), (0,))),
        preferred_element_type=f32)
    out = jnp.sum(o_p, axis=0) + bo_ref[...]     # (TQ, D), f32

    # Dropout: eval-mode identity.
    # TODO(synk): training-mode dropout (pltpu.prng_random_bits mask) and the
    #             attention-mask path of the PyTorch module are not implemented.
    o_ref[...] = out.astype(o_ref.dtype)


def multi_head_attention(x, wqkv, wo, bo, *, heads, compute_dtype=jnp.bfloat16):
    """x: (B, N, D). wqkv: (3D, D), wo: (D, D), bo: (D,) in PyTorch layout.

    Returns (B, N, D) in x.dtype. Matmuls run with `compute_dtype` inputs and
    f32 accumulation; softmax math is f32.
    """
    B, N, D = x.shape
    assert D % heads == 0
    hd = D // heads
    scale = D ** (-0.5)   # NOTE: module semantics are dim**-0.5 (not head_dim**-0.5)

    # ---- one-time weight preparation in the wrapper (no in-kernel transposes) ----
    w = wqkv.astype(jnp.float32).reshape(3, heads, hd, D)
    w = w.at[0].multiply(scale)                                  # fold scale into Wq
    wqkv_hm = (jnp.transpose(w, (0, 1, 3, 2))                    # (3, heads, D, hd)
               .reshape(3 * heads, D, hd)
               .astype(compute_dtype))
    wo_hm = (wo.astype(jnp.float32).T                            # (D_in, D_out)
             .reshape(heads, hd, D)
             .astype(compute_dtype))
    bo2 = bo.reshape(1, D).astype(jnp.float32)
    x_c = x.astype(compute_dtype)

    # Query-tile the sequence when it divides cleanly (lane/sublane friendly).
    TQ = 128 if (N % 128 == 0) else N
    T = N // TQ

    kernel = functools.partial(_mha_kernel, heads=heads)

    return pl.pallas_call(
        kernel,
        out_shape=jax.ShapeDtypeStruct((B, N, D), x.dtype),
        grid_spec=pltpu.PrefetchScalarGridSpec(
            num_scalar_prefetch=0,
            grid=(B, T),
            in_specs=[
                pl.BlockSpec((None, TQ, D), lambda b, t: (b, t, 0)),      # x (query tile)
                pl.BlockSpec((None, N, D), lambda b, t: (b, 0, 0)),       # x (full seq, K/V)
                pl.BlockSpec((3 * heads, D, hd), lambda b, t: (0, 0, 0)), # Wqkv (head-major)
                pl.BlockSpec((heads, hd, D), lambda b, t: (0, 0, 0)),     # Wo   (head-major)
                pl.BlockSpec((1, D), lambda b, t: (0, 0)),                # bias
            ],
            out_specs=pl.BlockSpec((None, TQ, D), lambda b, t: (b, t, 0)),
        ),
        compiler_params=pltpu.CompilerParams(
            dimension_semantics=("parallel", "parallel")),
    )(x_c, x_c, wqkv_hm, wo_hm, bo2)


def _reference(x, wqkv, wo, bo, *, heads):
    """Pure-JAX f32 reference mirroring the PyTorch forward (mask=None, eval)."""
    B, N, D = x.shape
    hd = D // heads
    scale = D ** (-0.5)
    qkv = jnp.einsum('bnd,ed->bne', x, wqkv)           # (B, N, 3D)
    q, k, v = jnp.split(qkv, 3, axis=-1)

    def to_heads(t):                                   # 'b n (h d) -> b h n d'
        return t.reshape(B, N, heads, hd).transpose(0, 2, 1, 3)

    q, k, v = to_heads(q), to_heads(k), to_heads(v)
    dots = jnp.einsum('bhid,bhjd->bhij', q, k) * scale
    attn = jax.nn.softmax(dots, axis=-1)
    out = jnp.einsum('bhij,bhjd->bhid', attn, v)
    out = out.transpose(0, 2, 1, 3).reshape(B, N, D)   # 'b h n d -> b n (h d)'
    return jnp.einsum('bnd,ed->bne', out, wo) + bo


if __name__ == "__main__":
    B, N, D, heads = 2, 8, 32, 4
    dropout_rate = 0.1  # eval-mode -> identity

    key = jax.random.PRNGKey(0)
    kx, kw1, kw2, kb = jax.random.split(key, 4)

    x = jax.random.normal(kx, (B, N, D), dtype=jnp.float32)
    # Deterministic parameter init (shapes per nn.Linear(out, in)).
    wqkv = jax.random.normal(kw1, (3 * D, D), dtype=jnp.float32) * (D ** -0.5)
    wo = jax.random.normal(kw2, (D, D), dtype=jnp.float32) * (D ** -0.5)
    bo = jax.random.normal(kb, (D,), dtype=jnp.float32) * 0.02

    out = multi_head_attention(x, wqkv, wo, bo, heads=heads)
    out = jax.block_until_ready(out)

    ref = _reference(x, wqkv, wo, bo, heads=heads)
    assert out.shape == (B, N, D)
    # bf16 matmul inputs with f32 accumulation -> loosened tolerance vs f32 ref.
    assert jnp.allclose(out, ref, atol=5e-2, rtol=5e-2), "mismatch vs reference"

    print("KERNEL_OK")
</pallas_src>

<mosaic_0001>
module attributes {stable_mosaic.version = 11 : i64} {
  func.func @_mha_kernel(%arg0: i32, %arg1: i32, %arg2: memref<1x8x32xbf16, #tpu.memory_space<vmem>>, %arg3: memref<1x8x32xbf16, #tpu.memory_space<vmem>>, %arg4: memref<12x32x8xbf16, #tpu.memory_space<vmem>>, %arg5: memref<4x8x32xbf16, #tpu.memory_space<vmem>>, %arg6: memref<1x32xf32, #tpu.memory_space<vmem>>, %arg7: memref<1x8x32xf32, #tpu.memory_space<vmem>>) attributes {dimension_semantics = [#tpu.dimension_semantics<parallel>, #tpu.dimension_semantics<parallel>], iteration_bounds = array<i64: 2, 1>, scalar_prefetch = 0 : i64, scratch_operands = 0 : i64, tpu.core_type = #tpu.core_type<tc>, window_params = [{transform_indices = @transform_0, window_bounds = array<i64: 1, 8, 32>}, {transform_indices = @transform_1, window_bounds = array<i64: 1, 8, 32>}, {pipeline_mode = #tpu.pipeline_mode<synchronous>, transform_indices = @transform_2, window_bounds = array<i64: 12, 32, 8>}, {pipeline_mode = #tpu.pipeline_mode<synchronous>, transform_indices = @transform_3, window_bounds = array<i64: 4, 8, 32>}, {pipeline_mode = #tpu.pipeline_mode<synchronous>, transform_indices = @transform_4, window_bounds = array<i64: 1, 32>}, {transform_indices = @transform_5, window_bounds = array<i64: 1, 8, 32>}]} {
    %c0 = arith.constant 0 : index
    %c0_0 = arith.constant 0 : index
    %c0_1 = arith.constant 0 : index
    %0 = vector.load %arg2[%c0, %c0_0, %c0_1] : memref<1x8x32xbf16, #tpu.memory_space<vmem>>, vector<1x8x32xbf16>
    %1 = vector.shape_cast %0 : vector<1x8x32xbf16> to vector<8x32xbf16>
    %c0_2 = arith.constant 0 : index
    %c0_3 = arith.constant 0 : index
    %c0_4 = arith.constant 0 : index
    %2 = vector.load %arg3[%c0_2, %c0_3, %c0_4] : memref<1x8x32xbf16, #tpu.memory_space<vmem>>, vector<1x8x32xbf16>
    %3 = vector.shape_cast %2 : vector<1x8x32xbf16> to vector<8x32xbf16>
    %c0_5 = arith.constant 0 : index
    %c0_6 = arith.constant 0 : index
    %c0_7 = arith.constant 0 : index
    %4 = vector.load %arg4[%c0_5, %c0_6, %c0_7] : memref<12x32x8xbf16, #tpu.memory_space<vmem>>, vector<12x32x8xbf16>
    %5 = vector.shape_cast %1 : vector<8x32xbf16> to vector<1x8x32xbf16>
    %6 = vector.shape_cast %5 : vector<1x8x32xbf16> to vector<1x8x32xbf16>
    %7 = vector.broadcast %6 : vector<1x8x32xbf16> to vector<4x8x32xbf16>
    %8 = vector.extract_strided_slice %4 {offsets = [0, 0, 0], sizes = [4, 32, 8], strides = [1, 1, 1]} : vector<12x32x8xbf16> to vector<4x32x8xbf16>
    %cst = arith.constant dense<0.000000e+00> : vector<4x8x8xf32>
    %9 = tpu.matmul %7, %8, %cst {dimension_numbers = #tpu.dot_dimension_numbers<[2], [1], [1], [2], [0, 0, 0, 1, 1, 2], [0], [0]>} : vector<4x8x32xbf16>, vector<4x32x8xbf16>, vector<4x8x8xf32> -> vector<4x8x8xf32>
    %10 = vector.shape_cast %3 : vector<8x32xbf16> to vector<1x8x32xbf16>
    %11 = vector.shape_cast %10 : vector<1x8x32xbf16> to vector<1x8x32xbf16>
    %12 = vector.broadcast %11 : vector<1x8x32xbf16> to vector<8x8x32xbf16>
    %13 = vector.extract_strided_slice %4 {offsets = [4, 0, 0], sizes = [8, 32, 8], strides = [1, 1, 1]} : vector<12x32x8xbf16> to vector<8x32x8xbf16>
    %cst_8 = arith.constant dense<0.000000e+00> : vector<8x8x8xf32>
    %14 = tpu.matmul %12, %13, %cst_8 {dimension_numbers = #tpu.dot_dimension_numbers<[2], [1], [1], [2], [0, 0, 0, 1, 1, 2], [0], [0]>} : vector<8x8x32xbf16>, vector<8x32x8xbf16>, vector<8x8x8xf32> -> vector<8x8x8xf32>
    %15 = vector.extract_strided_slice %14 {offsets = [0, 0, 0], sizes = [4, 8, 8], strides = [1, 1, 1]} : vector<8x8x8xf32> to vector<4x8x8xf32>
    %16 = vector.extract_strided_slice %14 {offsets = [4, 0, 0], sizes = [4, 8, 8], strides = [1, 1, 1]} : vector<8x8x8xf32> to vector<4x8x8xf32>
    %17 = arith.truncf %9 : vector<4x8x8xf32> to vector<4x8x8xbf16>
    %18 = arith.truncf %15 : vector<4x8x8xf32> to vector<4x8x8xbf16>
    %cst_9 = arith.constant dense<0.000000e+00> : vector<4x8x8xf32>
    %19 = tpu.matmul %17, %18, %cst_9 {dimension_numbers = #tpu.dot_dimension_numbers<[2], [2], [1], [1], [0, 0, 0, 1, 1, 1], [0], [0]>} : vector<4x8x8xbf16>, vector<4x8x8xbf16>, vector<4x8x8xf32> -> vector<4x8x8xf32>
    %cst_10 = arith.constant dense<0xFF800000> : vector<4x8xf32>
    %20 = vector.multi_reduction <maximumf>, %19, %cst_10 [2] : vector<4x8x8xf32> to vector<4x8xf32>
    %21 = vector.shape_cast %20 : vector<4x8xf32> to vector<4x8x1xf32>
    %22 = vector.broadcast %21 : vector<4x8x1xf32> to vector<4x8x8xf32>
    %23 = arith.subf %19, %22 : vector<4x8x8xf32>
    %24 = math.exp %23 : vector<4x8x8xf32>
    %cst_11 = arith.constant dense<0.000000e+00> : vector<4x8xf32>
    %25 = vector.multi_reduction <add>, %24, %cst_11 [2] : vector<4x8x8xf32> to vector<4x8xf32>
    %26 = vector.shape_cast %25 : vector<4x8xf32> to vector<4x8x1xf32>
    %27 = tpu.reciprocal %26 {approx = true} : vector<4x8x1xf32> -> vector<4x8x1xf32>
    %28 = vector.broadcast %27 : vector<4x8x1xf32> to vector<4x8x8xf32>
    %29 = arith.mulf %24, %28 : vector<4x8x8xf32>
    %30 = arith.truncf %29 : vector<4x8x8xf32> to vector<4x8x8xbf16>
    %31 = arith.truncf %16 : vector<4x8x8xf32> to vector<4x8x8xbf16>
    %cst_12 = arith.constant dense<0.000000e+00> : vector<4x8x8xf32>
    %32 = tpu.matmul %30, %31, %cst_12 {dimension_numbers = #tpu.dot_dimension_numbers<[2], [1], [1], [2], [0, 0, 0, 1, 1, 2], [0], [0]>} : vector<4x8x8xbf16>, vector<4x8x8xbf16>, vector<4x8x8xf32> -> vector<4x8x8xf32>
    %33 = arith.truncf %32 : vector<4x8x8xf32> to vector<4x8x8xbf16>
    %c0_13 = arith.constant 0 : index
    %c0_14 = arith.constant 0 : index
    %c0_15 = arith.constant 0 : index
    %34 = vector.load %arg5[%c0_13, %c0_14, %c0_15] : memref<4x8x32xbf16, #tpu.memory_space<vmem>>, vector<4x8x32xbf16>
    %cst_16 = arith.constant dense<0.000000e+00> : vector<4x8x32xf32>
    %35 = tpu.matmul %33, %34, %cst_16 {dimension_numbers = #tpu.dot_dimension_numbers<[2], [1], [1], [2], [0, 0, 0, 1, 1, 2], [0], [0]>} : vector<4x8x8xbf16>, vector<4x8x32xbf16>, vector<4x8x32xf32> -> vector<4x8x32xf32>
    %cst_17 = arith.constant dense<0.000000e+00> : vector<8x32xf32>
    %36 = vector.multi_reduction <add>, %35, %cst_17 [0] : vector<4x8x32xf32> to vector<8x32xf32>
    %c0_18 = arith.constant 0 : index
    %c0_19 = arith.constant 0 : index
    %37 = vector.load %arg6[%c0_18, %c0_19] : memref<1x32xf32, #tpu.memory_space<vmem>>, vector<1x32xf32>
    %38 = vector.broadcast %37 : vector<1x32xf32> to vector<8x32xf32>
    %39 = arith.addf %36, %38 : vector<8x32xf32>
    %c0_20 = arith.constant 0 : index
    %c0_21 = arith.constant 0 : index
    %c0_22 = arith.constant 0 : index
    %40 = vector.load %arg7[%c0_20, %c0_21, %c0_22] : memref<1x8x32xf32, #tpu.memory_space<vmem>>, vector<1x8x32xf32>
    %41 = vector.shape_cast %40 : vector<1x8x32xf32> to vector<8x32xf32>
    %42 = vector.shape_cast %39 : vector<8x32xf32> to vector<1x8x32xf32>
    tpu.vector_store %arg7[%c0_20, %c0_21, %c0_22], %42 {strides = array<i32>} : memref<1x8x32xf32, #tpu.memory_space<vmem>>, vector<1x8x32xf32>,
    return
  }
  func.func @transform_0(%arg0: i32, %arg1: i32) -> (i32, i32, i32) {
    %c0_i32 = arith.constant 0 : i32
    %c0_i32_0 = arith.constant 0 : i32
    return %arg0, %arg1, %c0_i32 : i32, i32, i32
  }
  func.func @transform_1(%arg0: i32, %arg1: i32) -> (i32, i32, i32) {
    %c0_i32 = arith.constant 0 : i32
    %c0_i32_0 = arith.constant 0 : i32
    %c0_i32_1 = arith.constant 0 : i32
    return %arg0, %c0_i32, %c0_i32_0 : i32, i32, i32
  }
  func.func @transform_2(%arg0: i32, %arg1: i32) -> (i32, i32, i32) {
    %c0_i32 = arith.constant 0 : i32
    %c0_i32_0 = arith.constant 0 : i32
    %c0_i32_1 = arith.constant 0 : i32
    %c0_i32_2 = arith.constant 0 : i32
    return %c0_i32, %c0_i32_0, %c0_i32_1 : i32, i32, i32
  }
  func.func @transform_3(%arg0: i32, %arg1: i32) -> (i32, i32, i32) {
    %c0_i32 = arith.constant 0 : i32
    %c0_i32_0 = arith.constant 0 : i32
    %c0_i32_1 = arith.constant 0 : i32
    %c0_i32_2 = arith.constant 0 : i32
    return %c0_i32, %c0_i32_0, %c0_i32_1 : i32, i32, i32
  }
  func.func @transform_4(%arg0: i32, %arg1: i32) -> (i32, i32) {
    %c0_i32 = arith.constant 0 : i32
    %c0_i32_0 = arith.constant 0 : i32
    %c0_i32_1 = arith.constant 0 : i32
    return %c0_i32, %c0_i32_0 : i32, i32
  }
  func.func @transform_5(%arg0: i32, %arg1: i32) -> (i32, i32, i32) {
    %c0_i32 = arith.constant 0 : i32
    %c0_i32_0 = arith.constant 0 : i32
    return %arg0, %arg1, %c0_i32 : i32, i32, i32
  }
}

</mosaic_0001>

<llo_original>
// kernel: tpu_custom_call.1
$region0: #{tpu_custom_call.1}
  #allocation0 [shape = 'u32[]', space=smem, size = 0x4, offset = 0x4, fixed_abs, tag = 'smem constant byte address 0x4 - core index']
  #allocation1 [shape = 'u32[144,128]{1,0:T(1,128)}', space=vmem, size = 0x12000, scoped, tag = 'internal scratch']
  %s0 = inlined_call_operand.vmem [shape: bf16[2,8,32], index: 0, kind: input, shape index: {}]
  %s1 = inlined_call_operand.vmem [shape: bf16[2,8,32], index: 1, kind: input, shape index: {}]
  %s2 = inlined_call_operand.vmem [shape: bf16[12,32,8], index: 2, kind: input, shape index: {}]
  %s3 = inlined_call_operand.vmem [shape: bf16[4,8,32], index: 3, kind: input, shape index: {}]
  %s4 = inlined_call_operand.vmem [shape: f32[1,32], index: 4, kind: input, shape index: {}]
  %s5 = inlined_call_operand.hbm [shape: f32[2,8,32], index: 5, kind: output, shape index: {}]
  %s6 = sld [smem:[#allocation0]]
  $region53: #{tpu_custom_call.1} parent=0
    _
  %s8 = ssub.s32 1, %s6
  %s9 = scalar_select 0, %s8, %s6
  $region1: #{tpu_custom_call.1} parent=0
    #allocation2 [shape = 'u8[8192]{0}', space=vmem, size = 0x2000, scoped, tag = 'output window, operand 0']
    #allocation3 [shape = 's32[2]{0}', space=sflag, size = 0x8, scoped, tag = 'scoped memory for tpu_custom_call.1']
    %10 = vsyncpa [#allocation3], 0
    %s11 = scalar_lea.sflag [#allocation3], 1
    %12 = vsyncpa %s11, 0
    loop: start=0, step=1, limit=4
    $region2: #{tpu_custom_call.1} parent=1 // loop_pre_header
      _
    $region3: #{tpu_custom_call.1} parent=1 // loop_header
      %s14 = sphi 0, %s18
      %p15 = scmp.ge.s32.totalorder %s14, 4
      %s21 = sphi 0, %s33
      %s22 = sphi 0, %s29
      %s23 = sphi 0, %s21
      %s24 = sphi 0, %s22
      %s25 = sphi 0, %s23
      %s26 = sphi 0, %s24
      %s38 = sphi 0, %s40
      %s41 = sphi 0, %s38
      %s42 = sphi 0, %s41
      %s58 = sphi 0, %s42
      %s64 = sphi 0, %s66
      %s67 = sphi 0, %s64
      %s68 = sphi 0, %s67
      %s84 = sphi 0, %s68
      %s88 = sphi 0, %s88
      %s90 = sphi 0, %s88
      %s91 = sphi 0, %s90
      %s105 = sphi 0, %s91
      %s109 = sphi 0, %s109
      %s111 = sphi 0, %s109
      %s112 = sphi 0, %s111
      %s126 = sphi 0, %s112
      %s130 = sphi 0, %s130
      %s132 = sphi 0, %s130
      %s133 = sphi 0, %s132
      %s147 = sphi 0, %s133
      %s155 = sphi 0, %s157
      %s158 = sphi 0, %s155
      %s159 = sphi 0, %s158
      %s175 = sphi 0, %s159
    $region4: #{tpu_custom_call.1} parent=1 // loop_header_branch
      %17 = sbr.rel (%p15) target = $region8
    $region5: #{tpu_custom_call.1} parent=1 // loop_body
      %s19 = ssub.s32 %s14, 1
      %s20 = ssub.s32 %s14, 2
      %s27 = sadd.s32 1, %s22
      %p28 = scmp.ge.s32.totalorder %s27, 1
      %s29 = scalar_select %p28, 0, %s27
      %s30 = sadd.s32 1, %s21
      %s31 = scalar_select %p28, %s30, %s21
      %p32 = scmp.ge.s32.totalorder %s31, 2
      %s33 = scalar_select %p32, 0, %s31
      %s34 = ssub.s32 %s21, %s33
      %s35 = ssub.s32 %s22, %s29
      %s36 = sor.u32 %s34, %s35
      %p37 = scmp.eq.s32.totalorder %s36, 0
      %s39 = sadd.s32 %s38, 1
      %s40 = scalar_select %p37, %s38, %s39
      %p43 = pneg %p37
      %p44 = scmp.eq.s32.totalorder %s14, 1
      %p45 = por %p43, %p44
      %p46 = scmp.ne.s32.totalorder %s38, %s41
      %p47 = scmp.eq.s32.totalorder %s14, 0
      %p48 = por %p46, %p47
      %p49 = scmp.ne.s32.totalorder %s38, %s41
      %p50 = scmp.eq.s32.totalorder %s19, 1
      %p51 = por %p49, %p50
      %p52 = scmp.ne.s32.totalorder %s41, %s42
      %p53 = scmp.eq.s32.totalorder %s19, 0
      %p54 = por %p52, %p53
      %p55 = scmp.ne.s32.totalorder %s41, %s42
      %p56 = scmp.eq.s32.totalorder %s20, 1
      %p57 = por %p55, %p56
      %p59 = scmp.ne.s32.totalorder %s42, %s58
      %p60 = scmp.eq.s32.totalorder %s20, 0
      %p61 = por %p59, %p60
      %s62 = ssub.s32 %s21, %s33
      %p63 = scmp.eq.s32.totalorder %s62, 0
      %s65 = sadd.s32 %s64, 1
      %s66 = scalar_select %p63, %s64, %s65
      %p69 = pneg %p63
      %p70 = scmp.eq.s32.totalorder %s14, 1
      %p71 = por %p69, %p70
      %p72 = scmp.ne.s32.totalorder %s64, %s67
      %p73 = scmp.eq.s32.totalorder %s14, 0
      %p74 = por %p72, %p73
      %p75 = scmp.ne.s32.totalorder %s64, %s67
      %p76 = scmp.eq.s32.totalorder %s19, 1
      %p77 = por %p75, %p76
      %p78 = scmp.ne.s32.totalorder %s67, %s68
      %p79 = scmp.eq.s32.totalorder %s19, 0
      %p80 = por %p78, %p79
      %p81 = scmp.ne.s32.totalorder %s67, %s68
      %p82 = scmp.eq.s32.totalorder %s20, 1
      %p83 = por %p81, %p82
      %p85 = scmp.ne.s32.totalorder %s68, %s84
      %p86 = scmp.eq.s32.totalorder %s20, 0
      %p87 = por %p85, %p86
      %s89 = sadd.s32 %s88, 1
      %p92 = scmp.eq.s32.totalorder %s14, 1
      %p93 = scmp.ne.s32.totalorder %s88, %s90
      %p94 = scmp.eq.s32.totalorder %s14, 0
      %p95 = por %p93, %p94
      %p96 = scmp.ne.s32.totalorder %s88, %s90
      %p97 = scmp.eq.s32.totalorder %s19, 1
      %p98 = por %p96, %p97
      %p99 = scmp.ne.s32.totalorder %s90, %s91
      %p100 = scmp.eq.s32.totalorder %s19, 0
      %p101 = por %p99, %p100
      %p102 = scmp.ne.s32.totalorder %s90, %s91
      %p103 = scmp.eq.s32.totalorder %s20, 1
      %p104 = por %p102, %p103
      %p106 = scmp.ne.s32.totalorder %s91, %s105
      %p107 = scmp.eq.s32.totalorder %s20, 0
      %p108 = por %p106, %p107
      %s110 = sadd.s32 %s109, 1
      %p113 = scmp.eq.s32.totalorder %s14, 1
      %p114 = scmp.ne.s32.totalorder %s109, %s111
      %p115 = scmp.eq.s32.totalorder %s14, 0
      %p116 = por %p114, %p115
      %p117 = scmp.ne.s32.totalorder %s109, %s111
      %p118 = scmp.eq.s32.totalorder %s19, 1
      %p119 = por %p117, %p118
      %p120 = scmp.ne.s32.totalorder %s111, %s112
      %p121 = scmp.eq.s32.totalorder %s19, 0
      %p122 = por %p120, %p121
      %p123 = scmp.ne.s32.totalorder %s111, %s112
      %p124 = scmp.eq.s32.totalorder %s20, 1
      %p125 = por %p123, %p124
      %p127 = scmp.ne.s32.totalorder %s112, %s126
      %p128 = scmp.eq.s32.totalorder %s20, 0
      %p129 = por %p127, %p128
      %s131 = sadd.s32 %s130, 1
      %p134 = scmp.eq.s32.totalorder %s14, 1
      %p135 = scmp.ne.s32.totalorder %s130, %s132
      %p136 = scmp.eq.s32.totalorder %s14, 0
      %p137 = por %p135, %p136
      %p138 = scmp.ne.s32.totalorder %s130, %s132
      %p139 = scmp.eq.s32.totalorder %s19, 1
      %p140 = por %p138, %p139
      %p141 = scmp.ne.s32.totalorder %s132, %s133
      %p142 = scmp.eq.s32.totalorder %s19, 0
      %p143 = por %p141, %p142
      %p144 = scmp.ne.s32.totalorder %s132, %s133
      %p145 = scmp.eq.s32.totalorder %s20, 1
      %p146 = por %p144, %p145
      %p148 = scmp.ne.s32.totalorder %s133, %s147
      %p149 = scmp.eq.s32.totalorder %s20, 0
      %p150 = por %p148, %p149
      %s151 = ssub.s32 %s21, %s33
      %s152 = ssub.s32 %s22, %s29
      %s153 = sor.u32 %s151, %s152
      %p154 = scmp.eq.s32.totalorder %s153, 0
      %s156 = sadd.s32 %s155, 1
      %s157 = scalar_select %p154, %s155, %s156
      %p160 = pneg %p154
      %p161 = scmp.eq.s32.totalorder %s14, 1
      %p162 = por %p160, %p161
      %p163 = scmp.ne.s32.totalorder %s155, %s158
      %p164 = scmp.eq.s32.totalorder %s14, 0
      %p165 = por %p163, %p164
      %p166 = scmp.ne.s32.totalorder %s155, %s158
      %p167 = scmp.eq.s32.totalorder %s19, 1
      %p168 = por %p166, %p167
      %p169 = scmp.ne.s32.totalorder %s158, %s159
      %p170 = scmp.eq.s32.totalorder %s19, 0
      %p171 = por %p169, %p170
      %p172 = scmp.ne.s32.totalorder %s158, %s159
      %p173 = scmp.eq.s32.totalorder %s20, 1
      %p174 = por %p172, %p173
      %p176 = scmp.ne.s32.totalorder %s159, %s175
      %p177 = scmp.eq.s32.totalorder %s20, 0
      %p178 = por %p176, %p177
      %p179 = scmp.le.s32.totalorder 1, %s14
      %p180 = scmp.lt.s32.totalorder %s14, 3
      %p181 = pnand %p179, %p180
      %p182 = pneg %p181
      // Predicated region
      $region9: #{tpu_custom_call.1} parent=5 // pred_check
        _
      $region10: #{tpu_custom_call.1} parent=5 // pred_check_branch
        %184 = sbr.rel (%p181) target = $region12
      $region11: #{tpu_custom_call.1} parent=5 // pred_region
        %s185 = ssub.s32 %s14, 1
        // Predicated region
        $region13: #{tpu_custom_call.1} parent=11 // pred_check
          %p186 = pneg %p101
        $region14: #{tpu_custom_call.1} parent=11 // pred_check_branch
          %188 = sbr.rel (%p186) target = $region16
        $region15: #{tpu_custom_call.1} parent=11 // pred_region
          _
        $region16: #{tpu_custom_call.1} parent=11 // pred_fallthru
          _
        // Predicated region
        $region17: #{tpu_custom_call.1} parent=11 // pred_check
          %p189 = pneg %p122
        $region18: #{tpu_custom_call.1} parent=11 // pred_check_branch
          %191 = sbr.rel (%p189) target = $region20
        $region19: #{tpu_custom_call.1} parent=11 // pred_region
          _
        $region20: #{tpu_custom_call.1} parent=11 // pred_fallthru
          _
        // Predicated region
        $region21: #{tpu_custom_call.1} parent=11 // pred_check
          %p192 = pneg %p143
        $region22: #{tpu_custom_call.1} parent=11 // pred_check_branch
          %194 = sbr.rel (%p192) target = $region24
        $region23: #{tpu_custom_call.1} parent=11 // pred_region
          _
        $region24: #{tpu_custom_call.1} parent=11 // pred_fallthru
          _
      $region12: #{tpu_custom_call.1} parent=5 // pred_fallthru
        _
      %p195 = scmp.lt.s32.totalorder %s14, 2
      // Predicated region
      $region25: #{tpu_custom_call.1} parent=5 // pred_check
        %p196 = pneg %p195
      $region26: #{tpu_custom_call.1} parent=5 // pred_check_branch
        %198 = sbr.rel (%p196) target = $region28
      $region27: #{tpu_custom_call.1} parent=5 // pred_region
        // Predicated region
        $region29: #{tpu_custom_call.1} parent=27 // pred_check
          %p199 = pneg %p48
        $region30: #{tpu_custom_call.1} parent=27 // pred_check_branch
          %201 = sbr.rel (%p199) target = $region32
        $region31: #{tpu_custom_call.1} parent=27 // pred_region
          %p202 = scmp.lt.s32.totalorder %s21, 1
          %s203 = scalar_select %p202, %s21, 1
          %p204 = scmp.lt.s32.totalorder %s22, 0
          %s205 = scalar_select %p204, %s22, 0
          %s206 = sadd.s32 %s205, %s203
          %s207 = smul.addr %s206, 4
          %s208 = scalar_lea.vmem %s0, %s207
        $region32: #{tpu_custom_call.1} parent=27 // pred_fallthru
          _
        // Predicated region
        $region33: #{tpu_custom_call.1} parent=27 // pred_check
          %p209 = pneg %p74
        $region34: #{tpu_custom_call.1} parent=27 // pred_check_branch
          %211 = sbr.rel (%p209) target = $region36
        $region35: #{tpu_custom_call.1} parent=27 // pred_region
          %p212 = scmp.lt.s32.totalorder %s21, 1
          %s213 = scalar_select %p212, %s21, 1
          %s214 = smul.addr %s213, 4
          %s215 = scalar_lea.vmem %s1, %s214
        $region36: #{tpu_custom_call.1} parent=27 // pred_fallthru
          _
      $region28: #{tpu_custom_call.1} parent=5 // pred_fallthru
        _
      %p216 = scmp.le.s32.totalorder 1, %s14
      %p217 = scmp.lt.s32.totalorder %s14, 3
      %p218 = pnand %p216, %p217
      %p219 = pneg %p218
      // Predicated region
      $region37: #{tpu_custom_call.1} parent=5 // pred_check
        _
      $region38: #{tpu_custom_call.1} parent=5 // pred_check_branch
        %221 = sbr.rel (%p218) target = $region40
      $region39: #{tpu_custom_call.1} parent=5 // pred_region
        %s222 = ssub.s32 %s14, 1
        %p223 = scmp.lt.s32.totalorder %s23, 1
        %s224 = scalar_select %p223, %s23, 1
        %p225 = scmp.lt.s32.totalorder %s24, 0
        %s226 = scalar_select %p225, %s24, 0
        %s227 = sadd.s32 %s226, %s224
        %s228 = smul.addr %s227, 4
        %s229 = scalar_lea.vmem %s0, %s228
        %p230 = pneg %p54
        %p231 = pneg %p51
        %p232 = scmp.lt.s32.totalorder %s23, 1
        %s233 = scalar_select %p232, %s23, 1
        %s234 = smul.addr %s233, 4
        %s235 = scalar_lea.vmem %s1, %s234
        %p236 = pneg %p80
        %p237 = pneg %p77
        %p238 = pneg %p101
        %p239 = pneg %p98
        %p240 = pneg %p122
        %p241 = pneg %p119
        %p242 = pneg %p143
        %p243 = pneg %p140
        %p244 = pneg %p171
        %p245 = pneg %p168
        %s246 = sand.u32 %s158, 1
        %s247 = scalar_lea.sflag [#allocation3], %s246
        %s248 = sand.u32 %s158, 1
        %s249 = smul.addr %s248, 8
        %s250 = scalar_lea.vmem [#allocation2], %s249
        %p251 = scmp.lt.s32.totalorder %s23, 1
        %s252 = scalar_select %p251, %s23, 1
        %p253 = scmp.lt.s32.totalorder %s24, 0
        %s254 = scalar_select %p253, %s24, 0
        %s255 = sadd.s32 %s254, %s252
        %s256 = smul.addr %s255, 4
        %s257 = scalar_lea.vmem %s0, %s256
        %p258 = scmp.lt.s32.totalorder %s23, 1
        %s259 = scalar_select %p258, %s23, 1
        %s260 = smul.addr %s259, 4
        %s261 = scalar_lea.vmem %s1, %s260
        %v263 = vld [vmem:[%s257] sm:$0xf]
        %v264 = vld [vmem:[%s261] sm:$0xf]
        %v265 = vld [vmem:[%s2] sm:$0xf]
        %v266 = vld [vmem:[%s2 + $0x4] sm:$0xf]
        %v267 = vld [vmem:[%s2 + $0x8] sm:$0xf]
        %v268 = vld [vmem:[%s2 + $0xc] sm:$0xf]
        %v269 = vld [vmem:[%s2 + $0x10] sm:$0xf]
        %v270 = vld [vmem:[%s2 + $0x14] sm:$0xf]
        %v271 = vld [vmem:[%s2 + $0x18] sm:$0xf]
        %v272 = vld [vmem:[%s2 + $0x1c] sm:$0xf]
        %v273 = vld [vmem:[%s2 + $0x20] sm:$0xf]
        %v274 = vld [vmem:[%s2 + $0x24] sm:$0xf]
        %v275 = vld [vmem:[%s2 + $0x28] sm:$0xf]
        %v276 = vld [vmem:[%s2 + $0x2c] sm:$0xf]
        %v277 = vld [vmem:[%s2 + $0x30] sm:$0xf]
        %v278 = vld [vmem:[%s2 + $0x34] sm:$0xf]
        %v279 = vld [vmem:[%s2 + $0x38] sm:$0xf]
        %v280 = vld [vmem:[%s2 + $0x3c] sm:$0xf]
        %v281 = vld [vmem:[%s2 + $0x40] sm:$0xf]
        %v282 = vld [vmem:[%s2 + $0x44] sm:$0xf]
        %v283 = vld [vmem:[%s2 + $0x48] sm:$0xf]
        %v284 = vld [vmem:[%s2 + $0x4c] sm:$0xf]
        %v285 = vld [vmem:[%s2 + $0x50] sm:$0xf]
        %v286 = vld [vmem:[%s2 + $0x54] sm:$0xf]
        %v287 = vld [vmem:[%s2 + $0x58] sm:$0xf]
        %v288 = vld [vmem:[%s2 + $0x5c] sm:$0xf]
        %v289 = vld [vmem:[%s2 + $0x60] sm:$0xf]
        %v290 = vld [vmem:[%s2 + $0x64] sm:$0xf]
        %v291 = vld [vmem:[%s2 + $0x68] sm:$0xf]
        %v292 = vld [vmem:[%s2 + $0x6c] sm:$0xf]
        %v293 = vld [vmem:[%s2 + $0x70] sm:$0xf]
        %v294 = vld [vmem:[%s2 + $0x74] sm:$0xf]
        %v295 = vld [vmem:[%s2 + $0x78] sm:$0xf]
        %v296 = vld [vmem:[%s2 + $0x7c] sm:$0xf]
        %v297 = vld [vmem:[%s2 + $0x80] sm:$0xf]
        %v298 = vld [vmem:[%s2 + $0x84] sm:$0xf]
        %v299 = vld [vmem:[%s2 + $0x88] sm:$0xf]
        %v300 = vld [vmem:[%s2 + $0x8c] sm:$0xf]
        %v301 = vld [vmem:[%s2 + $0x90] sm:$0xf]
        %v302 = vld [vmem:[%s2 + $0x94] sm:$0xf]
        %v303 = vld [vmem:[%s2 + $0x98] sm:$0xf]
        %v304 = vld [vmem:[%s2 + $0x9c] sm:$0xf]
        %v305 = vld [vmem:[%s2 + $0xa0] sm:$0xf]
        %v306 = vld [vmem:[%s2 + $0xa4] sm:$0xf]
        %v307 = vld [vmem:[%s2 + $0xa8] sm:$0xf]
        %v308 = vld [vmem:[%s2 + $0xac] sm:$0xf]
        %v309 = vld [vmem:[%s2 + $0xb0] sm:$0xf]
        %v310 = vld [vmem:[%s2 + $0xb4] sm:$0xf]
        %v311 = vld [vmem:[%s2 + $0xb8] sm:$0xf]
        %v312 = vld [vmem:[%s2 + $0xbc] sm:$0xf]
        %v317 = vunpack.c.l.b16 %v265
        %v318 = vunpack.c.l.b16 %v266
        %v319 = vunpack.c.l.b16 %v267
        %v320 = vunpack.c.l.b16 %v268
        %v321 = vpack.c.b16 %v318, %v317
        %v322 = vpack.c.b16 %v320, %v319
        %vm325 = vcmask 261120
        %v327 = vsel %vm325, %v263, 0
        %329 = vmatprep.subr.bf16.mxu0 0
        %330 = vmatpush1.bf16.msra.mxu0 %v321
        %331 = vmatprep.subr.bf16.mxu0 0
        %332 = vmatpush1.bf16.msra.mxu0 %v322
        %333 = vmatprep.subr.bf16.mxu0 0
        %334 = vmatpush1.bf16.msra.mxu0 0
        %335 = vmatprep.subr.bf16.mxu0 0
        %336 = vmatpush1.bf16.msra.mxu0 0
        %337 = vmatprep.subr.bf16.mxu0 0
        %338 = vmatpush1.bf16.msra.mxu0 0
        %339 = vmatprep.subr.bf16.mxu0 0
        %340 = vmatpush1.bf16.msra.mxu0 0
        %341 = vmatprep.subr.bf16.mxu0 0
        %342 = vmatpush1.bf16.msra.mxu0 0
        %343 = vmatprep.subr.bf16.mxu0 0
        %344 = vmatpush1.bf16.msra.mxu0 0
        %345 = vmatprep.subr.bf16.mxu0 0
        %346 = vmatpush1.bf16.msra.mxu0 0
        %347 = vmatprep.subr.bf16.mxu0 0
        %348 = vmatpush1.bf16.msra.mxu0 0
        %349 = vmatprep.subr.bf16.mxu0 0
        %350 = vmatpush1.bf16.msra.mxu0 0
        %351 = vmatprep.subr.bf16.mxu0 0
        %352 = vmatpush1.bf16.msra.mxu0 0
        %353 = vmatprep.subr.bf16.mxu0 0
        %354 = vmatpush1.bf16.msra.mxu0 0
        %355 = vmatprep.subr.bf16.mxu0 0
        %356 = vmatpush1.bf16.msra.mxu0 0
        %357 = vmatprep.subr.bf16.mxu0 0
        %358 = vmatpush1.bf16.msra.mxu0 0
        %359 = vmatprep.subr.bf16.mxu0 0
        %360 = vmatpush1.bf16.msra.mxu0 0
        %361 = vmatprep.mubr.bf16.mxu0 0
        %362 = vmatmul.mubr.bf16.gmra.mrb[0].mxu0 %v327
        %v363 = vpop.f32.mrb[0].mxu0
        %v364 = vadd.f32 0.0, %v363
        %v365 = vpop.f32.mrb[0].mxu0
        %v366 = vpop.f32.mrb[0].mxu0
        %v367 = vpop.f32.mrb[0].mxu0
        %368 = vdwg.mxu0
        %v373 = vunpack.c.l.b16 %v269
        %v374 = vunpack.c.l.b16 %v270
        %v375 = vunpack.c.l.b16 %v271
        %v376 = vunpack.c.l.b16 %v272
        %v377 = vpack.c.b16 %v374, %v373
        %v378 = vpack.c.b16 %v376, %v375
        %381 = vmatprep.subr.bf16.mxu0 0
        %382 = vmatpush1.bf16.msra.mxu0 %v377
        %383 = vmatprep.subr.bf16.mxu0 0
        %384 = vmatpush1.bf16.msra.mxu0 %v378
        %385 = vmatprep.subr.bf16.mxu0 0
        %386 = vmatpush1.bf16.msra.mxu0 0
        %387 = vmatprep.subr.bf16.mxu0 0
        %388 = vmatpush1.bf16.msra.mxu0 0
        %389 = vmatprep.subr.bf16.mxu0 0
        %390 = vmatpush1.bf16.msra.mxu0 0
        %391 = vmatprep.subr.bf16.mxu0 0
        %392 = vmatpush1.bf16.msra.mxu0 0
        %393 = vmatprep.subr.bf16.mxu0 0
        %394 = vmatpush1.bf16.msra.mxu0 0
        %395 = vmatprep.subr.bf16.mxu0 0
        %396 = vmatpush1.bf16.msra.mxu0 0
        %397 = vmatprep.subr.bf16.mxu0 0
        %398 = vmatpush1.bf16.msra.mxu0 0
        %399 = vmatprep.subr.bf16.mxu0 0
        %400 = vmatpush1.bf16.msra.mxu0 0
        %401 = vmatprep.subr.bf16.mxu0 0
        %402 = vmatpush1.bf16.msra.mxu0 0
        %403 = vmatprep.subr.bf16.mxu0 0
        %404 = vmatpush1.bf16.msra.mxu0 0
        %405 = vmatprep.subr.bf16.mxu0 0
        %406 = vmatpush1.bf16.msra.mxu0 0
        %407 = vmatprep.subr.bf16.mxu0 0
        %408 = vmatpush1.bf16.msra.mxu0 0
        %409 = vmatprep.subr.bf16.mxu0 0
        %410 = vmatpush1.bf16.msra.mxu0 0
        %411 = vmatprep.subr.bf16.mxu0 0
        %412 = vmatpush1.bf16.msra.mxu0 0
        %413 = vmatprep.mubr.bf16.mxu0 0
        %414 = vmatmul.mubr.bf16.gmra.mrb[0].mxu0 %v327
        %v415 = vpop.f32.mrb[0].mxu0
        %v416 = vadd.f32 0.0, %v415
        %v417 = vpop.f32.mrb[0].mxu0
        %v418 = vpop.f32.mrb[0].mxu0
        %v419 = vpop.f32.mrb[0].mxu0
        %420 = vdwg.mxu0
        %v425 = vunpack.c.l.b16 %v273
        %v426 = vunpack.c.l.b16 %v274
        %v427 = vunpack.c.l.b16 %v275
        %v428 = vunpack.c.l.b16 %v276
        %v429 = vpack.c.b16 %v426, %v425
        %v430 = vpack.c.b16 %v428, %v427
        %433 = vmatprep.subr.bf16.mxu0 0
        %434 = vmatpush1.bf16.msra.mxu0 %v429
        %435 = vmatprep.subr.bf16.mxu0 0
        %436 = vmatpush1.bf16.msra.mxu0 %v430
        %437 = vmatprep.subr.bf16.mxu0 0
        %438 = vmatpush1.bf16.msra.mxu0 0
        %439 = vmatprep.subr.bf16.mxu0 0
        %440 = vmatpush1.bf16.msra.mxu0 0
        %441 = vmatprep.subr.bf16.mxu0 0
        %442 = vmatpush1.bf16.msra.mxu0 0
        %443 = vmatprep.subr.bf16.mxu0 0
        %444 = vmatpush1.bf16.msra.mxu0 0
        %445 = vmatprep.subr.bf16.mxu0 0
        %446 = vmatpush1.bf16.msra.mxu0 0
        %447 = vmatprep.subr.bf16.mxu0 0
        %448 = vmatpush1.bf16.msra.mxu0 0
        %449 = vmatprep.subr.bf16.mxu0 0
        %450 = vmatpush1.bf16.msra.mxu0 0
        %451 = vmatprep.subr.bf16.mxu0 0
        %452 = vmatpush1.bf16.msra.mxu0 0
        %453 = vmatprep.subr.bf16.mxu0 0
        %454 = vmatpush1.bf16.msra.mxu0 0
        %455 = vmatprep.subr.bf16.mxu0 0
        %456 = vmatpush1.bf16.msra.mxu0 0
        %457 = vmatprep.subr.bf16.mxu0 0
        %458 = vmatpush1.bf16.msra.mxu0 0
        %459 = vmatprep.subr.bf16.mxu0 0
        %460 = vmatpush1.bf16.msra.mxu0 0
        %461 = vmatprep.subr.bf16.mxu0 0
        %462 = vmatpush1.bf16.msra.mxu0 0
        %463 = vmatprep.subr.bf16.mxu0 0
        %464 = vmatpush1.bf16.msra.mxu0 0
        %465 = vmatprep.mubr.bf16.mxu0 0
        %466 = vmatmul.mubr.bf16.gmra.mrb[0].mxu0 %v327
        %v467 = vpop.f32.mrb[0].mxu0
        %v468 = vadd.f32 0.0, %v467
        %v469 = vpop.f32.mrb[0].mxu0
        %v470 = vpop.f32.mrb[0].mxu0
        %v471 = vpop.f32.mrb[0].mxu0
        %472 = vdwg.mxu0
        %v477 = vunpack.c.l.b16 %v277
        %v478 = vunpack.c.l.b16 %v278
        %v479 = vunpack.c.l.b16 %v279
        %v480 = vunpack.c.l.b16 %v280
        %v481 = vpack.c.b16 %v478, %v477
        %v482 = vpack.c.b16 %v480, %v479
        %485 = vmatprep.subr.bf16.mxu0 0
        %486 = vmatpush1.bf16.msra.mxu0 %v481
        %487 = vmatprep.subr.bf16.mxu0 0
        %488 = vmatpush1.bf16.msra.mxu0 %v482
        %489 = vmatprep.subr.bf16.mxu0 0
        %490 = vmatpush1.bf16.msra.mxu0 0
        %491 = vmatprep.subr.bf16.mxu0 0
        %492 = vmatpush1.bf16.msra.mxu0 0
        %493 = vmatprep.subr.bf16.mxu0 0
        %494 = vmatpush1.bf16.msra.mxu0 0
        %495 = vmatprep.subr.bf16.mxu0 0
        %496 = vmatpush1.bf16.msra.mxu0 0
        %497 = vmatprep.subr.bf16.mxu0 0
        %498 = vmatpush1.bf16.msra.mxu0 0
        %499 = vmatprep.subr.bf16.mxu0 0
        %500 = vmatpush1.bf16.msra.mxu0 0
        %501 = vmatprep.subr.bf16.mxu0 0
        %502 = vmatpush1.bf16.msra.mxu0 0
        %503 = vmatprep.subr.bf16.mxu0 0
        %504 = vmatpush1.bf16.msra.mxu0 0
        %505 = vmatprep.subr.bf16.mxu0 0
        %506 = vmatpush1.bf16.msra.mxu0 0
        %507 = vmatprep.subr.bf16.mxu0 0
        %508 = vmatpush1.bf16.msra.mxu0 0
        %509 = vmatprep.subr.bf16.mxu0 0
        %510 = vmatpush1.bf16.msra.mxu0 0
        %511 = vmatprep.subr.bf16.mxu0 0
        %512 = vmatpush1.bf16.msra.mxu0 0
        %513 = vmatprep.subr.bf16.mxu0 0
        %514 = vmatpush1.bf16.msra.mxu0 0
        %515 = vmatprep.subr.bf16.mxu0 0
        %516 = vmatpush1.bf16.msra.mxu0 0
        %517 = vmatprep.mubr.bf16.mxu0 0
        %518 = vmatmul.mubr.bf16.gmra.mrb[0].mxu0 %v327
        %v519 = vpop.f32.mrb[0].mxu0
        %v520 = vadd.f32 0.0, %v519
        %v521 = vpop.f32.mrb[0].mxu0
        %v522 = vpop.f32.mrb[0].mxu0
        %v523 = vpop.f32.mrb[0].mxu0
        %524 = vdwg.mxu0
        %v529 = vunpack.c.l.b16 %v281
        %v530 = vunpack.c.l.b16 %v282
        %v531 = vunpack.c.l.b16 %v283
        %v532 = vunpack.c.l.b16 %v284
        %v533 = vpack.c.b16 %v530, %v529
        %v534 = vpack.c.b16 %v532, %v531
        %v538 = vsel %vm325, %v264, 0
        %540 = vmatprep.subr.bf16.mxu0 0
        %541 = vmatpush1.bf16.msra.mxu0 %v533
        %542 = vmatprep.subr.bf16.mxu0 0
        %543 = vmatpush1.bf16.msra.mxu0 %v534
        %544 = vmatprep.subr.bf16.mxu0 0
        %545 = vmatpush1.bf16.msra.mxu0 0
        %546 = vmatprep.subr.bf16.mxu0 0
        %547 = vmatpush1.bf16.msra.mxu0 0
        %548 = vmatprep.subr.bf16.mxu0 0
        %549 = vmatpush1.bf16.msra.mxu0 0
        %550 = vmatprep.subr.bf16.mxu0 0
        %551 = vmatpush1.bf16.msra.mxu0 0
        %552 = vmatprep.subr.bf16.mxu0 0
        %553 = vmatpush1.bf16.msra.mxu0 0
        %554 = vmatprep.subr.bf16.mxu0 0
        %555 = vmatpush1.bf16.msra.mxu0 0
        %556 = vmatprep.subr.bf16.mxu0 0
        %557 = vmatpush1.bf16.msra.mxu0 0
        %558 = vmatprep.subr.bf16.mxu0 0
        %559 = vmatpush1.bf16.msra.mxu0 0
        %560 = vmatprep.subr.bf16.mxu0 0
        %561 = vmatpush1.bf16.msra.mxu0 0
        %562 = vmatprep.subr.bf16.mxu0 0
        %563 = vmatpush1.bf16.msra.mxu0 0
        %564 = vmatprep.subr.bf16.mxu0 0
        %565 = vmatpush1.bf16.msra.mxu0 0
        %566 = vmatprep.subr.bf16.mxu0 0
        %567 = vmatpush1.bf16.msra.mxu0 0
        %568 = vmatprep.subr.bf16.mxu0 0
        %569 = vmatpush1.bf16.msra.mxu0 0
        %570 = vmatprep.subr.bf16.mxu0 0
        %571 = vmatpush1.bf16.msra.mxu0 0
        %572 = vmatprep.mubr.bf16.mxu0 0
        %573 = vmatmul.mubr.bf16.gmra.mrb[0].mxu0 %v538
        %v574 = vpop.f32.mrb[0].mxu0
        %v575 = vadd.f32 0.0, %v574
        %v576 = vpop.f32.mrb[0].mxu0
        %v577 = vpop.f32.mrb[0].mxu0
        %v578 = vpop.f32.mrb[0].mxu0
        %579 = vdwg.mxu0
        %v584 = vunpack.c.l.b16 %v285
        %v585 = vunpack.c.l.b16 %v286
        %v586 = vunpack.c.l.b16 %v287
        %v587 = vunpack.c.l.b16 %v288
        %v588 = vpack.c.b16 %v585, %v584
        %v589 = vpack.c.b16 %v587, %v586
        %592 = vmatprep.subr.bf16.mxu0 0
        %593 = vmatpush1.bf16.msra.mxu0 %v588
        %594 = vmatprep.subr.bf16.mxu0 0
        %595 = vmatpush1.bf16.msra.mxu0 %v589
        %596 = vmatprep.subr.bf16.mxu0 0
        %597 = vmatpush1.bf16.msra.mxu0 0
        %598 = vmatprep.subr.bf16.mxu0 0
        %599 = vmatpush1.bf16.msra.mxu0 0
        %600 = vmatprep.subr.bf16.mxu0 0
        %601 = vmatpush1.bf16.msra.mxu0 0
        %602 = vmatprep.subr.bf16.mxu0 0
        %603 = vmatpush1.bf16.msra.mxu0 0
        %604 = vmatprep.subr.bf16.mxu0 0
        %605 = vmatpush1.bf16.msra.mxu0 0
        %606 = vmatprep.subr.bf16.mxu0 0
        %607 = vmatpush1.bf16.msra.mxu0 0
        %608 = vmatprep.subr.bf16.mxu0 0
        %609 = vmatpush1.bf16.msra.mxu0 0
        %610 = vmatprep.subr.bf16.mxu0 0
        %611 = vmatpush1.bf16.msra.mxu0 0
        %612 = vmatprep.subr.bf16.mxu0 0
        %613 = vmatpush1.bf16.msra.mxu0 0
        %614 = vmatprep.subr.bf16.mxu0 0
        %615 = vmatpush1.bf16.msra.mxu0 0
        %616 = vmatprep.subr.bf16.mxu0 0
        %617 = vmatpush1.bf16.msra.mxu0 0
        %618 = vmatprep.subr.bf16.mxu0 0
        %619 = vmatpush1.bf16.msra.mxu0 0
        %620 = vmatprep.subr.bf16.mxu0 0
        %621 = vmatpush1.bf16.msra.mxu0 0
        %622 = vmatprep.subr.bf16.mxu0 0
        %623 = vmatpush1.bf16.msra.mxu0 0
        %624 = vmatprep.mubr.bf16.mxu0 0
        %625 = vmatmul.mubr.bf16.gmra.mrb[0].mxu0 %v538
        %v626 = vpop.f32.mrb[0].mxu0
        %v627 = vadd.f32 0.0, %v626
        %v628 = vpop.f32.mrb[0].mxu0
        %v629 = vpop.f32.mrb[0].mxu0
        %v630 = vpop.f32.mrb[0].mxu0
        %631 = vdwg.mxu0
        %v636 = vunpack.c.l.b16 %v289
        %v637 = vunpack.c.l.b16 %v290
        %v638 = vunpack.c.l.b16 %v291
        %v639 = vunpack.c.l.b16 %v292
        %v640 = vpack.c.b16 %v637, %v636
        %v641 = vpack.c.b16 %v639, %v638
        %644 = vmatprep.subr.bf16.mxu0 0
        %645 = vmatpush1.bf16.msra.mxu0 %v640
        %646 = vmatprep.subr.bf16.mxu0 0
        %647 = vmatpush1.bf16.msra.mxu0 %v641
        %648 = vmatprep.subr.bf16.mxu0 0
        %649 = vmatpush1.bf16.msra.mxu0 0
        %650 = vmatprep.subr.bf16.mxu0 0
        %651 = vmatpush1.bf16.msra.mxu0 0
        %652 = vmatprep.subr.bf16.mxu0 0
        %653 = vmatpush1.bf16.msra.mxu0 0
        %654 = vmatprep.subr.bf16.mxu0 0
        %655 = vmatpush1.bf16.msra.mxu0 0
        %656 = vmatprep.subr.bf16.mxu0 0
        %657 = vmatpush1.bf16.msra.mxu0 0
        %658 = vmatprep.subr.bf16.mxu0 0
        %659 = vmatpush1.bf16.msra.mxu0 0
        %660 = vmatprep.subr.bf16.mxu0 0
        %661 = vmatpush1.bf16.msra.mxu0 0
        %662 = vmatprep.subr.bf16.mxu0 0
        %663 = vmatpush1.bf16.msra.mxu0 0
        %664 = vmatprep.subr.bf16.mxu0 0
        %665 = vmatpush1.bf16.msra.mxu0 0
        %666 = vmatprep.subr.bf16.mxu0 0
        %667 = vmatpush1.bf16.msra.mxu0 0
        %668 = vmatprep.subr.bf16.mxu0 0
        %669 = vmatpush1.bf16.msra.mxu0 0
        %670 = vmatprep.subr.bf16.mxu0 0
        %671 = vmatpush1.bf16.msra.mxu0 0
        %672 = vmatprep.subr.bf16.mxu0 0
        %673 = vmatpush1.bf16.msra.mxu0 0
        %674 = vmatprep.subr.bf16.mxu0 0
        %675 = vmatpush1.bf16.msra.mxu0 0
        %676 = vmatprep.mubr.bf16.mxu0 0
        %677 = vmatmul.mubr.bf16.gmra.mrb[0].mxu0 %v538
        %v678 = vpop.f32.mrb[0].mxu0
        %v679 = vadd.f32 0.0, %v678
        %v680 = vpop.f32.mrb[0].mxu0
        %v681 = vpop.f32.mrb[0].mxu0
        %v682 = vpop.f32.mrb[0].mxu0
        %683 = vdwg.mxu0
        %v688 = vunpack.c.l.b16 %v293
        %v689 = vunpack.c.l.b16 %v294
        %v690 = vunpack.c.l.b16 %v295
        %v691 = vunpack.c.l.b16 %v296
        %v692 = vpack.c.b16 %v689, %v688
        %v693 = vpack.c.b16 %v691, %v690
        %696 = vmatprep.subr.bf16.mxu0 0
        %697 = vmatpush1.bf16.msra.mxu0 %v692
        %698 = vmatprep.subr.bf16.mxu0 0
        %699 = vmatpush1.bf16.msra.mxu0 %v693
        %700 = vmatprep.subr.bf16.mxu0 0
        %701 = vmatpush1.bf16.msra.mxu0 0
        %702 = vmatprep.subr.bf16.mxu0 0
        %703 = vmatpush1.bf16.msra.mxu0 0
        %704 = vmatprep.subr.bf16.mxu0 0
        %705 = vmatpush1.bf16.msra.mxu0 0
        %706 = vmatprep.subr.bf16.mxu0 0
        %707 = vmatpush1.bf16.msra.mxu0 0
        %708 = vmatprep.subr.bf16.mxu0 0
        %709 = vmatpush1.bf16.msra.mxu0 0
        %710 = vmatprep.subr.bf16.mxu0 0
        %711 = vmatpush1.bf16.msra.mxu0 0
        %712 = vmatprep.subr.bf16.mxu0 0
        %713 = vmatpush1.bf16.msra.mxu0 0
        %714 = vmatprep.subr.bf16.mxu0 0
        %715 = vmatpush1.bf16.msra.mxu0 0
        %716 = vmatprep.subr.bf16.mxu0 0
        %717 = vmatpush1.bf16.msra.mxu0 0
        %718 = vmatprep.subr.bf16.mxu0 0
        %719 = vmatpush1.bf16.msra.mxu0 0
        %720 = vmatprep.subr.bf16.mxu0 0
        %721 = vmatpush1.bf16.msra.mxu0 0
        %722 = vmatprep.subr.bf16.mxu0 0
        %723 = vmatpush1.bf16.msra.mxu0 0
        %724 = vmatprep.subr.bf16.mxu0 0
        %725 = vmatpush1.bf16.msra.mxu0 0
        %726 = vmatprep.subr.bf16.mxu0 0
        %727 = vmatpush1.bf16.msra.mxu0 0
        %728 = vmatprep.mubr.bf16.mxu0 0
        %729 = vmatmul.mubr.bf16.gmra.mrb[0].mxu0 %v538
        %v730 = vpop.f32.mrb[0].mxu0
        %v731 = vadd.f32 0.0, %v730
        %v732 = vpop.f32.mrb[0].mxu0
        %v733 = vpop.f32.mrb[0].mxu0
        %v734 = vpop.f32.mrb[0].mxu0
        %735 = vdwg.mxu0
        %v740 = vunpack.c.l.b16 %v297
        %v741 = vunpack.c.l.b16 %v298
        %v742 = vunpack.c.l.b16 %v299
        %v743 = vunpack.c.l.b16 %v300
        %v744 = vpack.c.b16 %v741, %v740
        %v745 = vpack.c.b16 %v743, %v742
        %748 = vmatprep.subr.bf16.mxu0 0
        %749 = vmatpush1.bf16.msra.mxu0 %v744
        %750 = vmatprep.subr.bf16.mxu0 0
        %751 = vmatpush1.bf16.msra.mxu0 %v745
        %752 = vmatprep.subr.bf16.mxu0 0
        %753 = vmatpush1.bf16.msra.mxu0 0
        %754 = vmatprep.subr.bf16.mxu0 0
        %755 = vmatpush1.bf16.msra.mxu0 0
        %756 = vmatprep.subr.bf16.mxu0 0
        %757 = vmatpush1.bf16.msra.mxu0 0
        %758 = vmatprep.subr.bf16.mxu0 0
        %759 = vmatpush1.bf16.msra.mxu0 0
        %760 = vmatprep.subr.bf16.mxu0 0
        %761 = vmatpush1.bf16.msra.mxu0 0
        %762 = vmatprep.subr.bf16.mxu0 0
        %763 = vmatpush1.bf16.msra.mxu0 0
        %764 = vmatprep.subr.bf16.mxu0 0
        %765 = vmatpush1.bf16.msra.mxu0 0
        %766 = vmatprep.subr.bf16.mxu0 0
        %767 = vmatpush1.bf16.msra.mxu0 0
        %768 = vmatprep.subr.bf16.mxu0 0
        %769 = vmatpush1.bf16.msra.mxu0 0
        %770 = vmatprep.subr.bf16.mxu0 0
        %771 = vmatpush1.bf16.msra.mxu0 0
        %772 = vmatprep.subr.bf16.mxu0 0
        %773 = vmatpush1.bf16.msra.mxu0 0
        %774 = vmatprep.subr.bf16.mxu0 0
        %775 = vmatpush1.bf16.msra.mxu0 0
        %776 = vmatprep.subr.bf16.mxu0 0
        %777 = vmatpush1.bf16.msra.mxu0 0
        %778 = vmatprep.subr.bf16.mxu0 0
        %779 = vmatpush1.bf16.msra.mxu0 0
        %780 = vmatprep.mubr.bf16.mxu0 0
        %781 = vmatmul.mubr.bf16.gmra.mrb[0].mxu0 %v538
        %v782 = vpop.f32.mrb[0].mxu0
        %v783 = vadd.f32 0.0, %v782
        %v784 = vpop.f32.mrb[0].mxu0
        %v785 = vpop.f32.mrb[0].mxu0
        %v786 = vpop.f32.mrb[0].mxu0
        %787 = vdwg.mxu0
        %v792 = vunpack.c.l.b16 %v301
        %v793 = vunpack.c.l.b16 %v302
        %v794 = vunpack.c.l.b16 %v303
        %v795 = vunpack.c.l.b16 %v304
        %v796 = vpack.c.b16 %v793, %v792
        %v797 = vpack.c.b16 %v795, %v794
        %800 = vmatprep.subr.bf16.mxu0 0
        %801 = vmatpush1.bf16.msra.mxu0 %v796
        %802 = vmatprep.subr.bf16.mxu0 0
        %803 = vmatpush1.bf16.msra.mxu0 %v797
        %804 = vmatprep.subr.bf16.mxu0 0
        %805 = vmatpush1.bf16.msra.mxu0 0
        %806 = vmatprep.subr.bf16.mxu0 0
        %807 = vmatpush1.bf16.msra.mxu0 0
        %808 = vmatprep.subr.bf16.mxu0 0
        %809 = vmatpush1.bf16.msra.mxu0 0
        %810 = vmatprep.subr.bf16.mxu0 0
        %811 = vmatpush1.bf16.msra.mxu0 0
        %812 = vmatprep.subr.bf16.mxu0 0
        %813 = vmatpush1.bf16.msra.mxu0 0
        %814 = vmatprep.subr.bf16.mxu0 0
        %815 = vmatpush1.bf16.msra.mxu0 0
        %816 = vmatprep.subr.bf16.mxu0 0
        %817 = vmatpush1.bf16.msra.mxu0 0
        %818 = vmatprep.subr.bf16.mxu0 0
        %819 = vmatpush1.bf16.msra.mxu0 0
        %820 = vmatprep.subr.bf16.mxu0 0
        %821 = vmatpush1.bf16.msra.mxu0 0
        %822 = vmatprep.subr.bf16.mxu0 0
        %823 = vmatpush1.bf16.msra.mxu0 0
        %824 = vmatprep.subr.bf16.mxu0 0
        %825 = vmatpush1.bf16.msra.mxu0 0
        %826 = vmatprep.subr.bf16.mxu0 0
        %827 = vmatpush1.bf16.msra.mxu0 0
        %828 = vmatprep.subr.bf16.mxu0 0
        %829 = vmatpush1.bf16.msra.mxu0 0
        %830 = vmatprep.subr.bf16.mxu0 0
        %831 = vmatpush1.bf16.msra.mxu0 0
        %832 = vmatprep.mubr.bf16.mxu0 0
        %833 = vmatmul.mubr.bf16.gmra.mrb[0].mxu0 %v538
        %v834 = vpop.f32.mrb[0].mxu0
        %v835 = vadd.f32 0.0, %v834
        %v836 = vpop.f32.mrb[0].mxu0
        %v837 = vpop.f32.mrb[0].mxu0
        %v838 = vpop.f32.mrb[0].mxu0
        %839 = vdwg.mxu0
        %v844 = vunpack.c.l.b16 %v305
        %v845 = vunpack.c.l.b16 %v306
        %v846 = vunpack.c.l.b16 %v307
        %v847 = vunpack.c.l.b16 %v308
        %v848 = vpack.c.b16 %v845, %v844
        %v849 = vpack.c.b16 %v847, %v846
        %852 = vmatprep.subr.bf16.mxu0 0
        %853 = vmatpush1.bf16.msra.mxu0 %v848
        %854 = vmatprep.subr.bf16.mxu0 0
        %855 = vmatpush1.bf16.msra.mxu0 %v849
        %856 = vmatprep.subr.bf16.mxu0 0
        %857 = vmatpush1.bf16.msra.mxu0 0
        %858 = vmatprep.subr.bf16.mxu0 0
        %859 = vmatpush1.bf16.msra.mxu0 0
        %860 = vmatprep.subr.bf16.mxu0 0
        %861 = vmatpush1.bf16.msra.mxu0 0
        %862 = vmatprep.subr.bf16.mxu0 0
        %863 = vmatpush1.bf16.msra.mxu0 0
        %864 = vmatprep.subr.bf16.mxu0 0
        %865 = vmatpush1.bf16.msra.mxu0 0
        %866 = vmatprep.subr.bf16.mxu0 0
        %867 = vmatpush1.bf16.msra.mxu0 0
        %868 = vmatprep.subr.bf16.mxu0 0
        %869 = vmatpush1.bf16.msra.mxu0 0
        %870 = vmatprep.subr.bf16.mxu0 0
        %871 = vmatpush1.bf16.msra.mxu0 0
        %872 = vmatprep.subr.bf16.mxu0 0
        %873 = vmatpush1.bf16.msra.mxu0 0
        %874 = vmatprep.subr.bf16.mxu0 0
        %875 = vmatpush1.bf16.msra.mxu0 0
        %876 = vmatprep.subr.bf16.mxu0 0
        %877 = vmatpush1.bf16.msra.mxu0 0
        %878 = vmatprep.subr.bf16.mxu0 0
        %879 = vmatpush1.bf16.msra.mxu0 0
        %880 = vmatprep.subr.bf16.mxu0 0
        %881 = vmatpush1.bf16.msra.mxu0 0
        %882 = vmatprep.subr.bf16.mxu0 0
        %883 = vmatpush1.bf16.msra.mxu0 0
        %884 = vmatprep.mubr.bf16.mxu0 0
        %885 = vmatmul.mubr.bf16.gmra.mrb[0].mxu0 %v538
        %v886 = vpop.f32.mrb[0].mxu0
        %v887 = vadd.f32 0.0, %v886
        %v888 = vpop.f32.mrb[0].mxu0
        %v889 = vpop.f32.mrb[0].mxu0
        %v890 = vpop.f32.mrb[0].mxu0
        %891 = vdwg.mxu0
        %v896 = vunpack.c.l.b16 %v309
        %v897 = vunpack.c.l.b16 %v310
        %v898 = vunpack.c.l.b16 %v311
        %v899 = vunpack.c.l.b16 %v312
        %v900 = vpack.c.b16 %v897, %v896
        %v901 = vpack.c.b16 %v899, %v898
        %904 = vmatprep.subr.bf16.mxu0 0
        %905 = vmatpush1.bf16.msra.mxu0 %v900
        %906 = vmatprep.subr.bf16.mxu0 0
        %907 = vmatpush1.bf16.msra.mxu0 %v901
        %908 = vmatprep.subr.bf16.mxu0 0
        %909 = vmatpush1.bf16.msra.mxu0 0
        %910 = vmatprep.subr.bf16.mxu0 0
        %911 = vmatpush1.bf16.msra.mxu0 0
        %912 = vmatprep.subr.bf16.mxu0 0
        %913 = vmatpush1.bf16.msra.mxu0 0
        %914 = vmatprep.subr.bf16.mxu0 0
        %915 = vmatpush1.bf16.msra.mxu0 0
        %916 = vmatprep.subr.bf16.mxu0 0
        %917 = vmatpush1.bf16.msra.mxu0 0
        %918 = vmatprep.subr.bf16.mxu0 0
        %919 = vmatpush1.bf16.msra.mxu0 0
        %920 = vmatprep.subr.bf16.mxu0 0
        %921 = vmatpush1.bf16.msra.mxu0 0
        %922 = vmatprep.subr.bf16.mxu0 0
        %923 = vmatpush1.bf16.msra.mxu0 0
        %924 = vmatprep.subr.bf16.mxu0 0
        %925 = vmatpush1.bf16.msra.mxu0 0
        %926 = vmatprep.subr.bf16.mxu0 0
        %927 = vmatpush1.bf16.msra.mxu0 0
        %928 = vmatprep.subr.bf16.mxu0 0
        %929 = vmatpush1.bf16.msra.mxu0 0
        %930 = vmatprep.subr.bf16.mxu0 0
        %931 = vmatpush1.bf16.msra.mxu0 0
        %932 = vmatprep.subr.bf16.mxu0 0
        %933 = vmatpush1.bf16.msra.mxu0 0
        %934 = vmatprep.subr.bf16.mxu0 0
        %935 = vmatpush1.bf16.msra.mxu0 0
        %936 = vmatprep.mubr.bf16.mxu0 0
        %937 = vmatmul.mubr.bf16.gmra.mrb[0].mxu0 %v538
        %v938 = vpop.f32.mrb[0].mxu0
        %v939 = vadd.f32 0.0, %v938
        %v940 = vpop.f32.mrb[0].mxu0
        %v941 = vpop.f32.mrb[0].mxu0
        %v942 = vpop.f32.mrb[0].mxu0
        %943 = vdwg.mxu0
        %v944 = vpack.c.bf16 %v364, %v364
        %v945 = vpack.c.bf16 %v416, %v416
        %v946 = vpack.c.bf16 %v468, %v468
        %v947 = vpack.c.bf16 %v520, %v520
        %v948 = vpack.c.bf16 %v575, %v575
        %v949 = vpack.c.bf16 %v627, %v627
        %v950 = vpack.c.bf16 %v679, %v679
        %v951 = vpack.c.bf16 %v731, %v731
        %vm952 = vcmask 64512
        %v954 = vsel %vm952, %v944, 0
        %v957 = vsel %vm952, %v948, 0
        %959 = vmatprep.subr.bf16.mxu0 0
        %960 = vmatpush1.bf16.xpose.msra.mxu0 %v957
        %961 = vmatprep.subr.bf16.mxu0 0
        %962 = vmatpush1.bf16.xpose.msra.mxu0 0
        %963 = vmatprep.subr.bf16.mxu0 0
        %964 = vmatpush1.bf16.xpose.msra.mxu0 0
        %965 = vmatprep.subr.bf16.mxu0 0
        %966 = vmatpush1.bf16.xpose.msra.mxu0 0
        %967 = vmatprep.subr.bf16.mxu0 0
        %968 = vmatpush1.bf16.xpose.msra.mxu0 0
        %969 = vmatprep.subr.bf16.mxu0 0
        %970 = vmatpush1.bf16.xpose.msra.mxu0 0
        %971 = vmatprep.subr.bf16.mxu0 0
        %972 = vmatpush1.bf16.xpose.msra.mxu0 0
        %973 = vmatprep.subr.bf16.mxu0 0
        %974 = vmatpush1.bf16.xpose.msra.mxu0 0
        %975 = vmatprep.subr.bf16.mxu0 0
        %976 = vmatpush1.bf16.xpose.msra.mxu0 0
        %977 = vmatprep.subr.bf16.mxu0 0
        %978 = vmatpush1.bf16.xpose.msra.mxu0 0
        %979 = vmatprep.subr.bf16.mxu0 0
        %980 = vmatpush1.bf16.xpose.msra.mxu0 0
        %981 = vmatprep.subr.bf16.mxu0 0
        %982 = vmatpush1.bf16.xpose.msra.mxu0 0
        %983 = vmatprep.subr.bf16.mxu0 0
        %984 = vmatpush1.bf16.xpose.msra.mxu0 0
        %985 = vmatprep.subr.bf16.mxu0 0
        %986 = vmatpush1.bf16.xpose.msra.mxu0 0
        %987 = vmatprep.subr.bf16.mxu0 0
        %988 = vmatpush1.bf16.xpose.msra.mxu0 0
        %989 = vmatprep.subr.bf16.mxu0 0
        %990 = vmatpush1.bf16.xpose.msra.mxu0 0
        %991 = vmatprep.mubr.bf16.mxu0 0
        %992 = vmatmul.mubr.bf16.gmra.mrb[0].mxu0 %v954
        %v993 = vpop.f32.mrb[0].mxu0
        %v994 = vadd.f32 0.0, %v993
        %v995 = vpop.f32.mrb[0].mxu0
        %v996 = vpop.f32.mrb[0].mxu0
        %v997 = vpop.f32.mrb[0].mxu0
        %998 = vdwg.mxu0
        %v1000 = vsel %vm952, %v945, 0
        %v1003 = vsel %vm952, %v949, 0
        %1005 = vmatprep.subr.bf16.mxu0 0
        %1006 = vmatpush1.bf16.xpose.msra.mxu0 %v1003
        %1007 = vmatprep.subr.bf16.mxu0 0
        %1008 = vmatpush1.bf16.xpose.msra.mxu0 0
        %1009 = vmatprep.subr.bf16.mxu0 0
        %1010 = vmatpush1.bf16.xpose.msra.mxu0 0
        %1011 = vmatprep.subr.bf16.mxu0 0
        %1012 = vmatpush1.bf16.xpose.msra.mxu0 0
        %1013 = vmatprep.subr.bf16.mxu0 0
        %1014 = vmatpush1.bf16.xpose.msra.mxu0 0
        %1015 = vmatprep.subr.bf16.mxu0 0
        %1016 = vmatpush1.bf16.xpose.msra.mxu0 0
        %1017 = vmatprep.subr.bf16.mxu0 0
        %1018 = vmatpush1.bf16.xpose.msra.mxu0 0
        %1019 = vmatprep.subr.bf16.mxu0 0
        %1020 = vmatpush1.bf16.xpose.msra.mxu0 0
        %1021 = vmatprep.subr.bf16.mxu0 0
        %1022 = vmatpush1.bf16.xpose.msra.mxu0 0
        %1023 = vmatprep.subr.bf16.mxu0 0
        %1024 = vmatpush1.bf16.xpose.msra.mxu0 0
        %1025 = vmatprep.subr.bf16.mxu0 0
        %1026 = vmatpush1.bf16.xpose.msra.mxu0 0
        %1027 = vmatprep.subr.bf16.mxu0 0
        %1028 = vmatpush1.bf16.xpose.msra.mxu0 0
        %1029 = vmatprep.subr.bf16.mxu0 0
        %1030 = vmatpush1.bf16.xpose.msra.mxu0 0
        %1031 = vmatprep.subr.bf16.mxu0 0
        %1032 = vmatpush1.bf16.xpose.msra.mxu0 0
        %1033 = vmatprep.subr.bf16.mxu0 0
        %1034 = vmatpush1.bf16.xpose.msra.mxu0 0
        %1035 = vmatprep.subr.bf16.mxu0 0
        %1036 = vmatpush1.bf16.xpose.msra.mxu0 0
        %1037 = vmatprep.mubr.bf16.mxu0 0
        %1038 = vmatmul.mubr.bf16.gmra.mrb[0].mxu0 %v1000
        %v1039 = vpop.f32.mrb[0].mxu0
        %v1040 = vadd.f32 0.0, %v1039
        %v1041 = vpop.f32.mrb[0].mxu0
        %v1042 = vpop.f32.mrb[0].mxu0
        %v1043 = vpop.f32.mrb[0].mxu0
        %1044 = vdwg.mxu0
        %v1046 = vsel %vm952, %v946, 0
        %v1049 = vsel %vm952, %v950, 0
        %1051 = vmatprep.subr.bf16.mxu0 0
        %1052 = vmatpush1.bf16.xpose.msra.mxu0 %v1049
        %1053 = vmatprep.subr.bf16.mxu0 0
        %1054 = vmatpush1.bf16.xpose.msra.mxu0 0
        %1055 = vmatprep.subr.bf16.mxu0 0
        %1056 = vmatpush1.bf16.xpose.msra.mxu0 0
        %1057 = vmatprep.subr.bf16.mxu0 0
        %1058 = vmatpush1.bf16.xpose.msra.mxu0 0
        %1059 = vmatprep.subr.bf16.mxu0 0
        %1060 = vmatpush1.bf16.xpose.msra.mxu0 0
        %1061 = vmatprep.subr.bf16.mxu0 0
        %1062 = vmatpush1.bf16.xpose.msra.mxu0 0
        %1063 = vmatprep.subr.bf16.mxu0 0
        %1064 = vmatpush1.bf16.xpose.msra.mxu0 0
        %1065 = vmatprep.subr.bf16.mxu0 0
        %1066 = vmatpush1.bf16.xpose.msra.mxu0 0
        %1067 = vmatprep.subr.bf16.mxu0 0
        %1068 = vmatpush1.bf16.xpose.msra.mxu0 0
        %1069 = vmatprep.subr.bf16.mxu0 0
        %1070 = vmatpush1.bf16.xpose.msra.mxu0 0
        %1071 = vmatprep.subr.bf16.mxu0 0
        %1072 = vmatpush1.bf16.xpose.msra.mxu0 0
        %1073 = vmatprep.subr.bf16.mxu0 0
        %1074 = vmatpush1.bf16.xpose.msra.mxu0 0
        %1075 = vmatprep.subr.bf16.mxu0 0
        %1076 = vmatpush1.bf16.xpose.msra.mxu0 0
        %1077 = vmatprep.subr.bf16.mxu0 0
        %1078 = vmatpush1.bf16.xpose.msra.mxu0 0
        %1079 = vmatprep.subr.bf16.mxu0 0
        %1080 = vmatpush1.bf16.xpose.msra.mxu0 0
        %1081 = vmatprep.subr.bf16.mxu0 0
        %1082 = vmatpush1.bf16.xpose.msra.mxu0 0
        %1083 = vmatprep.mubr.bf16.mxu0 0
        %1084 = vmatmul.mubr.bf16.gmra.mrb[0].mxu0 %v1046
        %v1085 = vpop.f32.mrb[0].mxu0
        %v1086 = vadd.f32 0.0, %v1085
        %v1087 = vpop.f32.mrb[0].mxu0
        %v1088 = vpop.f32.mrb[0].mxu0
        %v1089 = vpop.f32.mrb[0].mxu0
        %1090 = vdwg.mxu0
        %v1092 = vsel %vm952, %v947, 0
        %v1095 = vsel %vm952, %v951, 0
        %1097 = vmatprep.subr.bf16.mxu0 0
        %1098 = vmatpush1.bf16.xpose.msra.mxu0 %v1095
        %1099 = vmatprep.subr.bf16.mxu0 0
        %1100 = vmatpush1.bf16.xpose.msra.mxu0 0
        %1101 = vmatprep.subr.bf16.mxu0 0
        %1102 = vmatpush1.bf16.xpose.msra.mxu0 0
        %1103 = vmatprep.subr.bf16.mxu0 0
        %1104 = vmatpush1.bf16.xpose.msra.mxu0 0
        %1105 = vmatprep.subr.bf16.mxu0 0
        %1106 = vmatpush1.bf16.xpose.msra.mxu0 0
        %1107 = vmatprep.subr.bf16.mxu0 0
        %1108 = vmatpush1.bf16.xpose.msra.mxu0 0
        %1109 = vmatprep.subr.bf16.mxu0 0
        %1110 = vmatpush1.bf16.xpose.msra.mxu0 0
        %1111 = vmatprep.subr.bf16.mxu0 0
        %1112 = vmatpush1.bf16.xpose.msra.mxu0 0
        %1113 = vmatprep.subr.bf16.mxu0 0
        %1114 = vmatpush1.bf16.xpose.msra.mxu0 0
        %1115 = vmatprep.subr.bf16.mxu0 0
        %1116 = vmatpush1.bf16.xpose.msra.mxu0 0
        %1117 = vmatprep.subr.bf16.mxu0 0
        %1118 = vmatpush1.bf16.xpose.msra.mxu0 0
        %1119 = vmatprep.subr.bf16.mxu0 0
        %1120 = vmatpush1.bf16.xpose.msra.mxu0 0
        %1121 = vmatprep.subr.bf16.mxu0 0
        %1122 = vmatpush1.bf16.xpose.msra.mxu0 0
        %1123 = vmatprep.subr.bf16.mxu0 0
        %1124 = vmatpush1.bf16.xpose.msra.mxu0 0
        %1125 = vmatprep.subr.bf16.mxu0 0
        %1126 = vmatpush1.bf16.xpose.msra.mxu0 0
        %1127 = vmatprep.subr.bf16.mxu0 0
        %1128 = vmatpush1.bf16.xpose.msra.mxu0 0
        %1129 = vmatprep.mubr.bf16.mxu0 0
        %1130 = vmatmul.mubr.bf16.gmra.mrb[0].mxu0 %v1092
        %v1131 = vpop.f32.mrb[0].mxu0
        %v1132 = vadd.f32 0.0, %v1131
        %v1133 = vpop.f32.mrb[0].mxu0
        %v1134 = vpop.f32.mrb[0].mxu0
        %v1135 = vpop.f32.mrb[0].mxu0
        %1136 = vdwg.mxu0
        %v1137 = vsel %vm952, %v994, -inf
        %1138 = vmax.xlane.f32.xlu0 %v1137
        %v1139 = vpop.xlane.xlu0 %1138
        %v1140 = vsel %vm952, %v1040, -inf
        %1141 = vmax.xlane.f32.xlu0 %v1140
        %v1142 = vpop.xlane.xlu0 %1141
        %v1143 = vsel %vm952, %v1086, -inf
        %1144 = vmax.xlane.f32.xlu0 %v1143
        %v1145 = vpop.xlane.xlu0 %1144
        %v1146 = vsel %vm952, %v1132, -inf
        %1147 = vmax.xlane.f32.xlu0 %v1146
        %v1148 = vpop.xlane.xlu0 %1147
        %v1149 = vsub.f32 %v994, %v1139
        %v1150 = vsub.f32 %v1040, %v1142
        %v1151 = vsub.f32 %v1086, %v1145
        %v1152 = vsub.f32 %v1132, %v1148
        %v1153 = vmul.f32 %v1149, 1.442695
        %v1154 = vpow.pop %v1153
        %v1155 = vmul.f32 %v1150, 1.442695
        %v1156 = vpow.pop %v1155
        %v1157 = vmul.f32 %v1151, 1.442695
        %v1158 = vpow.pop %v1157
        %v1159 = vmul.f32 %v1152, 1.442695
        %v1160 = vpow.pop %v1159
        %v1161 = vsel %vm952, %v1154, 0.0
        %1162 = vadd.xlane.f32.xlu0 %v1161
        %v1163 = vpop.xlane.xlu0 %1162
        %v1164 = vsel %vm952, %v1156, 0.0
        %1165 = vadd.xlane.f32.xlu0 %v1164
        %v1166 = vpop.xlane.xlu0 %1165
        %v1167 = vsel %vm952, %v1158, 0.0
        %1168 = vadd.xlane.f32.xlu0 %v1167
        %v1169 = vpop.xlane.xlu0 %1168
        %v1170 = vsel %vm952, %v1160, 0.0
        %1171 = vadd.xlane.f32.xlu0 %v1170
        %v1172 = vpop.xlane.xlu0 %1171
        %v1173 = vrcp.pop %v1163
        %v1174 = vrcp.pop %v1166
        %v1175 = vrcp.pop %v1169
        %v1176 = vrcp.pop %v1172
        %v1177 = vmul.f32 %v1154, %v1173
        %v1178 = vmul.f32 %v1156, %v1174
        %v1179 = vmul.f32 %v1158, %v1175
        %v1180 = vmul.f32 %v1160, %v1176
        %v1181 = vpack.c.bf16 %v1177, %v1177
        %v1182 = vpack.c.bf16 %v1178, %v1178
        %v1183 = vpack.c.bf16 %v1179, %v1179
        %v1184 = vpack.c.bf16 %v1180, %v1180
        %v1185 = vpack.c.bf16 %v783, %v783
        %v1186 = vpack.c.bf16 %v835, %v835
        %v1187 = vpack.c.bf16 %v887, %v887
        %v1188 = vpack.c.bf16 %v939, %v939
        %v1190 = vsel %vm952, %v1181, 0
        %vm1192 = vcmask 1043456
        %v1194 = vsel %vm1192, %v1185, 0
        %1196 = vmatprep.subr.bf16.mxu0 0
        %1197 = vmatpush1.bf16.msra.mxu0 %v1194
        %1198 = vmatprep.subr.bf16.mxu0 0
        %1199 = vmatpush1.bf16.msra.mxu0 0
        %1200 = vmatprep.subr.bf16.mxu0 0
        %1201 = vmatpush1.bf16.msra.mxu0 0
        %1202 = vmatprep.subr.bf16.mxu0 0
        %1203 = vmatpush1.bf16.msra.mxu0 0
        %1204 = vmatprep.subr.bf16.mxu0 0
        %1205 = vmatpush1.bf16.msra.mxu0 0
        %1206 = vmatprep.subr.bf16.mxu0 0
        %1207 = vmatpush1.bf16.msra.mxu0 0
        %1208 = vmatprep.subr.bf16.mxu0 0
        %1209 = vmatpush1.bf16.msra.mxu0 0
        %1210 = vmatprep.subr.bf16.mxu0 0
        %1211 = vmatpush1.bf16.msra.mxu0 0
        %1212 = vmatprep.subr.bf16.mxu0 0
        %1213 = vmatpush1.bf16.msra.mxu0 0
        %1214 = vmatprep.subr.bf16.mxu0 0
        %1215 = vmatpush1.bf16.msra.mxu0 0
        %1216 = vmatprep.subr.bf16.mxu0 0
        %1217 = vmatpush1.bf16.msra.mxu0 0
        %1218 = vmatprep.subr.bf16.mxu0 0
        %1219 = vmatpush1.bf16.msra.mxu0 0
        %1220 = vmatprep.subr.bf16.mxu0 0
        %1221 = vmatpush1.bf16.msra.mxu0 0
        %1222 = vmatprep.subr.bf16.mxu0 0
        %1223 = vmatpush1.bf16.msra.mxu0 0
        %1224 = vmatprep.subr.bf16.mxu0 0
        %1225 = vmatpush1.bf16.msra.mxu0 0
        %1226 = vmatprep.subr.bf16.mxu0 0
        %1227 = vmatpush1.bf16.msra.mxu0 0
        %1228 = vmatprep.mubr.bf16.mxu0 0
        %1229 = vmatmul.mubr.bf16.gmra.mrb[0].mxu0 %v1190
        %v1230 = vpop.f32.mrb[0].mxu0
        %v1231 = vadd.f32 0.0, %v1230
        %v1232 = vpop.f32.mrb[0].mxu0
        %v1233 = vpop.f32.mrb[0].mxu0
        %v1234 = vpop.f32.mrb[0].mxu0
        %1235 = vdwg.mxu0
        %v1237 = vsel %vm952, %v1182, 0
        %v1240 = vsel %vm1192, %v1186, 0
        %1242 = vmatprep.subr.bf16.mxu0 0
        %1243 = vmatpush1.bf16.msra.mxu0 %v1240
        %1244 = vmatprep.subr.bf16.mxu0 0
        %1245 = vmatpush1.bf16.msra.mxu0 0
        %1246 = vmatprep.subr.bf16.mxu0 0
        %1247 = vmatpush1.bf16.msra.mxu0 0
        %1248 = vmatprep.subr.bf16.mxu0 0
        %1249 = vmatpush1.bf16.msra.mxu0 0
        %1250 = vmatprep.subr.bf16.mxu0 0
        %1251 = vmatpush1.bf16.msra.mxu0 0
        %1252 = vmatprep.subr.bf16.mxu0 0
        %1253 = vmatpush1.bf16.msra.mxu0 0
        %1254 = vmatprep.subr.bf16.mxu0 0
        %1255 = vmatpush1.bf16.msra.mxu0 0
        %1256 = vmatprep.subr.bf16.mxu0 0
        %1257 = vmatpush1.bf16.msra.mxu0 0
        %1258 = vmatprep.subr.bf16.mxu0 0
        %1259 = vmatpush1.bf16.msra.mxu0 0
        %1260 = vmatprep.subr.bf16.mxu0 0
        %1261 = vmatpush1.bf16.msra.mxu0 0
        %1262 = vmatprep.subr.bf16.mxu0 0
        %1263 = vmatpush1.bf16.msra.mxu0 0
        %1264 = vmatprep.subr.bf16.mxu0 0
        %1265 = vmatpush1.bf16.msra.mxu0 0
        %1266 = vmatprep.subr.bf16.mxu0 0
        %1267 = vmatpush1.bf16.msra.mxu0 0
        %1268 = vmatprep.subr.bf16.mxu0 0
        %1269 = vmatpush1.bf16.msra.mxu0 0
        %1270 = vmatprep.subr.bf16.mxu0 0
        %1271 = vmatpush1.bf16.msra.mxu0 0
        %1272 = vmatprep.subr.bf16.mxu0 0
        %1273 = vmatpush1.bf16.msra.mxu0 0
        %1274 = vmatprep.mubr.bf16.mxu0 0
        %1275 = vmatmul.mubr.bf16.gmra.mrb[0].mxu0 %v1237
        %v1276 = vpop.f32.mrb[0].mxu0
        %v1277 = vadd.f32 0.0, %v1276
        %v1278 = vpop.f32.mrb[0].mxu0
        %v1279 = vpop.f32.mrb[0].mxu0
        %v1280 = vpop.f32.mrb[0].mxu0
        %1281 = vdwg.mxu0
        %v1283 = vsel %vm952, %v1183, 0
        %v1286 = vsel %vm1192, %v1187, 0
        %1288 = vmatprep.subr.bf16.mxu0 0
        %1289 = vmatpush1.bf16.msra.mxu0 %v1286
        %1290 = vmatprep.subr.bf16.mxu0 0
        %1291 = vmatpush1.bf16.msra.mxu0 0
        %1292 = vmatprep.subr.bf16.mxu0 0
        %1293 = vmatpush1.bf16.msra.mxu0 0
        %1294 = vmatprep.subr.bf16.mxu0 0
        %1295 = vmatpush1.bf16.msra.mxu0 0
        %1296 = vmatprep.subr.bf16.mxu0 0
        %1297 = vmatpush1.bf16.msra.mxu0 0
        %1298 = vmatprep.subr.bf16.mxu0 0
        %1299 = vmatpush1.bf16.msra.mxu0 0
        %1300 = vmatprep.subr.bf16.mxu0 0
        %1301 = vmatpush1.bf16.msra.mxu0 0
        %1302 = vmatprep.subr.bf16.mxu0 0
        %1303 = vmatpush1.bf16.msra.mxu0 0
        %1304 = vmatprep.subr.bf16.mxu0 0
        %1305 = vmatpush1.bf16.msra.mxu0 0
        %1306 = vmatprep.subr.bf16.mxu0 0
        %1307 = vmatpush1.bf16.msra.mxu0 0
        %1308 = vmatprep.subr.bf16.mxu0 0
        %1309 = vmatpush1.bf16.msra.mxu0 0
        %1310 = vmatprep.subr.bf16.mxu0 0
        %1311 = vmatpush1.bf16.msra.mxu0 0
        %1312 = vmatprep.subr.bf16.mxu0 0
        %1313 = vmatpush1.bf16.msra.mxu0 0
        %1314 = vmatprep.subr.bf16.mxu0 0
        %1315 = vmatpush1.bf16.msra.mxu0 0
        %1316 = vmatprep.subr.bf16.mxu0 0
        %1317 = vmatpush1.bf16.msra.mxu0 0
        %1318 = vmatprep.subr.bf16.mxu0 0
        %1319 = vmatpush1.bf16.msra.mxu0 0
        %1320 = vmatprep.mubr.bf16.mxu0 0
        %1321 = vmatmul.mubr.bf16.gmra.mrb[0].mxu0 %v1283
        %v1322 = vpop.f32.mrb[0].mxu0
        %v1323 = vadd.f32 0.0, %v1322
        %v1324 = vpop.f32.mrb[0].mxu0
        %v1325 = vpop.f32.mrb[0].mxu0
        %v1326 = vpop.f32.mrb[0].mxu0
        %1327 = vdwg.mxu0
        %v1329 = vsel %vm952, %v1184, 0
        %v1332 = vsel %vm1192, %v1188, 0
        %1334 = vmatprep.subr.bf16.mxu0 0
        %1335 = vmatpush1.bf16.msra.mxu0 %v1332
        %1336 = vmatprep.subr.bf16.mxu0 0
        %1337 = vmatpush1.bf16.msra.mxu0 0
        %1338 = vmatprep.subr.bf16.mxu0 0
        %1339 = vmatpush1.bf16.msra.mxu0 0
        %1340 = vmatprep.subr.bf16.mxu0 0
        %1341 = vmatpush1.bf16.msra.mxu0 0
        %1342 = vmatprep.subr.bf16.mxu0 0
        %1343 = vmatpush1.bf16.msra.mxu0 0
        %1344 = vmatprep.subr.bf16.mxu0 0
        %1345 = vmatpush1.bf16.msra.mxu0 0
        %1346 = vmatprep.subr.bf16.mxu0 0
        %1347 = vmatpush1.bf16.msra.mxu0 0
        %1348 = vmatprep.subr.bf16.mxu0 0
        %1349 = vmatpush1.bf16.msra.mxu0 0
        %1350 = vmatprep.subr.bf16.mxu0 0
        %1351 = vmatpush1.bf16.msra.mxu0 0
        %1352 = vmatprep.subr.bf16.mxu0 0
        %1353 = vmatpush1.bf16.msra.mxu0 0
        %1354 = vmatprep.subr.bf16.mxu0 0
        %1355 = vmatpush1.bf16.msra.mxu0 0
        %1356 = vmatprep.subr.bf16.mxu0 0
        %1357 = vmatpush1.bf16.msra.mxu0 0
        %1358 = vmatprep.subr.bf16.mxu0 0
        %1359 = vmatpush1.bf16.msra.mxu0 0
        %1360 = vmatprep.subr.bf16.mxu0 0
        %1361 = vmatpush1.bf16.msra.mxu0 0
        %1362 = vmatprep.subr.bf16.mxu0 0
        %1363 = vmatpush1.bf16.msra.mxu0 0
        %1364 = vmatprep.subr.bf16.mxu0 0
        %1365 = vmatpush1.bf16.msra.mxu0 0
        %1366 = vmatprep.mubr.bf16.mxu0 0
        %1367 = vmatmul.mubr.bf16.gmra.mrb[0].mxu0 %v1329
        %v1368 = vpop.f32.mrb[0].mxu0
        %v1369 = vadd.f32 0.0, %v1368
        %v1370 = vpop.f32.mrb[0].mxu0
        %v1371 = vpop.f32.mrb[0].mxu0
        %v1372 = vpop.f32.mrb[0].mxu0
        %1373 = vdwg.mxu0
        %v1374 = vpack.c.bf16 %v1231, %v1231
        %v1375 = vpack.c.bf16 %v1277, %v1277
        %v1376 = vpack.c.bf16 %v1323, %v1323
        %v1377 = vpack.c.bf16 %v1369, %v1369
        %v1378 = vld [vmem:[%s3] sm:$0xf]
        %v1379 = vld [vmem:[%s3 + $0x4] sm:$0xf]
        %v1380 = vld [vmem:[%s3 + $0x8] sm:$0xf]
        %v1381 = vld [vmem:[%s3 + $0xc] sm:$0xf]
        %v1383 = vsel %vm952, %v1374, 0
        %v1386 = vsel %vm1192, %v1378, 0
        %1388 = vmatprep.subr.bf16.mxu0 0
        %1389 = vmatpush1.bf16.msra.mxu0 %v1386
        %1390 = vmatprep.subr.bf16.mxu0 0
        %1391 = vmatpush1.bf16.msra.mxu0 0
        %1392 = vmatprep.subr.bf16.mxu0 0
        %1393 = vmatpush1.bf16.msra.mxu0 0
        %1394 = vmatprep.subr.bf16.mxu0 0
        %1395 = vmatpush1.bf16.msra.mxu0 0
        %1396 = vmatprep.subr.bf16.mxu0 0
        %1397 = vmatpush1.bf16.msra.mxu0 0
        %1398 = vmatprep.subr.bf16.mxu0 0
        %1399 = vmatpush1.bf16.msra.mxu0 0
        %1400 = vmatprep.subr.bf16.mxu0 0
        %1401 = vmatpush1.bf16.msra.mxu0 0
        %1402 = vmatprep.subr.bf16.mxu0 0
        %1403 = vmatpush1.bf16.msra.mxu0 0
        %1404 = vmatprep.subr.bf16.mxu0 0
        %1405 = vmatpush1.bf16.msra.mxu0 0
        %1406 = vmatprep.subr.bf16.mxu0 0
        %1407 = vmatpush1.bf16.msra.mxu0 0
        %1408 = vmatprep.subr.bf16.mxu0 0
        %1409 = vmatpush1.bf16.msra.mxu0 0
        %1410 = vmatprep.subr.bf16.mxu0 0
        %1411 = vmatpush1.bf16.msra.mxu0 0
        %1412 = vmatprep.subr.bf16.mxu0 0
        %1413 = vmatpush1.bf16.msra.mxu0 0
        %1414 = vmatprep.subr.bf16.mxu0 0
        %1415 = vmatpush1.bf16.msra.mxu0 0
        %1416 = vmatprep.subr.bf16.mxu0 0
        %1417 = vmatpush1.bf16.msra.mxu0 0
        %1418 = vmatprep.subr.bf16.mxu0 0
        %1419 = vmatpush1.bf16.msra.mxu0 0
        %1420 = vmatprep.mubr.bf16.mxu0 0
        %1421 = vmatmul.mubr.bf16.gmra.mrb[0].mxu0 %v1383
        %v1422 = vpop.f32.mrb[0].mxu0
        %v1423 = vadd.f32 0.0, %v1422
        %v1424 = vpop.f32.mrb[0].mxu0
        %v1425 = vpop.f32.mrb[0].mxu0
        %v1426 = vpop.f32.mrb[0].mxu0
        %1427 = vdwg.mxu0
        %v1429 = vsel %vm952, %v1375, 0
        %v1432 = vsel %vm1192, %v1379, 0
        %1434 = vmatprep.subr.bf16.mxu0 0
        %1435 = vmatpush1.bf16.msra.mxu0 %v1432
        %1436 = vmatprep.subr.bf16.mxu0 0
        %1437 = vmatpush1.bf16.msra.mxu0 0
        %1438 = vmatprep.subr.bf16.mxu0 0
        %1439 = vmatpush1.bf16.msra.mxu0 0
        %1440 = vmatprep.subr.bf16.mxu0 0
        %1441 = vmatpush1.bf16.msra.mxu0 0
        %1442 = vmatprep.subr.bf16.mxu0 0
        %1443 = vmatpush1.bf16.msra.mxu0 0
        %1444 = vmatprep.subr.bf16.mxu0 0
        %1445 = vmatpush1.bf16.msra.mxu0 0
        %1446 = vmatprep.subr.bf16.mxu0 0
        %1447 = vmatpush1.bf16.msra.mxu0 0
        %1448 = vmatprep.subr.bf16.mxu0 0
        %1449 = vmatpush1.bf16.msra.mxu0 0
        %1450 = vmatprep.subr.bf16.mxu0 0
        %1451 = vmatpush1.bf16.msra.mxu0 0
        %1452 = vmatprep.subr.bf16.mxu0 0
        %1453 = vmatpush1.bf16.msra.mxu0 0
        %1454 = vmatprep.subr.bf16.mxu0 0
        %1455 = vmatpush1.bf16.msra.mxu0 0
        %1456 = vmatprep.subr.bf16.mxu0 0
        %1457 = vmatpush1.bf16.msra.mxu0 0
        %1458 = vmatprep.subr.bf16.mxu0 0
        %1459 = vmatpush1.bf16.msra.mxu0 0
        %1460 = vmatprep.subr.bf16.mxu0 0
        %1461 = vmatpush1.bf16.msra.mxu0 0
        %1462 = vmatprep.subr.bf16.mxu0 0
        %1463 = vmatpush1.bf16.msra.mxu0 0
        %1464 = vmatprep.subr.bf16.mxu0 0
        %1465 = vmatpush1.bf16.msra.mxu0 0
        %1466 = vmatprep.mubr.bf16.mxu0 0
        %1467 = vmatmul.mubr.bf16.gmra.mrb[0].mxu0 %v1429
        %v1468 = vpop.f32.mrb[0].mxu0
        %v1469 = vadd.f32 0.0, %v1468
        %v1470 = vpop.f32.mrb[0].mxu0
        %v1471 = vpop.f32.mrb[0].mxu0
        %v1472 = vpop.f32.mrb[0].mxu0
        %1473 = vdwg.mxu0
        %v1475 = vsel %vm952, %v1376, 0
        %v1478 = vsel %vm1192, %v1380, 0
        %1480 = vmatprep.subr.bf16.mxu0 0
        %1481 = vmatpush1.bf16.msra.mxu0 %v1478
        %1482 = vmatprep.subr.bf16.mxu0 0
        %1483 = vmatpush1.bf16.msra.mxu0 0
        %1484 = vmatprep.subr.bf16.mxu0 0
        %1485 = vmatpush1.bf16.msra.mxu0 0
        %1486 = vmatprep.subr.bf16.mxu0 0
        %1487 = vmatpush1.bf16.msra.mxu0 0
        %1488 = vmatprep.subr.bf16.mxu0 0
        %1489 = vmatpush1.bf16.msra.mxu0 0
        %1490 = vmatprep.subr.bf16.mxu0 0
        %1491 = vmatpush1.bf16.msra.mxu0 0
        %1492 = vmatprep.subr.bf16.mxu0 0
        %1493 = vmatpush1.bf16.msra.mxu0 0
        %1494 = vmatprep.subr.bf16.mxu0 0
        %1495 = vmatpush1.bf16.msra.mxu0 0
        %1496 = vmatprep.subr.bf16.mxu0 0
        %1497 = vmatpush1.bf16.msra.mxu0 0
        %1498 = vmatprep.subr.bf16.mxu0 0
        %1499 = vmatpush1.bf16.msra.mxu0 0
        %1500 = vmatprep.subr.bf16.mxu0 0
        %1501 = vmatpush1.bf16.msra.mxu0 0
        %1502 = vmatprep.subr.bf16.mxu0 0
        %1503 = vmatpush1.bf16.msra.mxu0 0
        %1504 = vmatprep.subr.bf16.mxu0 0
        %1505 = vmatpush1.bf16.msra.mxu0 0
        %1506 = vmatprep.subr.bf16.mxu0 0
        %1507 = vmatpush1.bf16.msra.mxu0 0
        %1508 = vmatprep.subr.bf16.mxu0 0
        %1509 = vmatpush1.bf16.msra.mxu0 0
        %1510 = vmatprep.subr.bf16.mxu0 0
        %1511 = vmatpush1.bf16.msra.mxu0 0
        %1512 = vmatprep.mubr.bf16.mxu0 0
        %1513 = vmatmul.mubr.bf16.gmra.mrb[0].mxu0 %v1475
        %v1514 = vpop.f32.mrb[0].mxu0
        %v1515 = vadd.f32 0.0, %v1514
        %v1516 = vpop.f32.mrb[0].mxu0
        %v1517 = vpop.f32.mrb[0].mxu0
        %v1518 = vpop.f32.mrb[0].mxu0
        %1519 = vdwg.mxu0
        %v1521 = vsel %vm952, %v1377, 0
        %v1524 = vsel %vm1192, %v1381, 0
        %1526 = vmatprep.subr.bf16.mxu0 0
        %1527 = vmatpush1.bf16.msra.mxu0 %v1524
        %1528 = vmatprep.subr.bf16.mxu0 0
        %1529 = vmatpush1.bf16.msra.mxu0 0
        %1530 = vmatprep.subr.bf16.mxu0 0
        %1531 = vmatpush1.bf16.msra.mxu0 0
        %1532 = vmatprep.subr.bf16.mxu0 0
        %1533 = vmatpush1.bf16.msra.mxu0 0
        %1534 = vmatprep.subr.bf16.mxu0 0
        %1535 = vmatpush1.bf16.msra.mxu0 0
        %1536 = vmatprep.subr.bf16.mxu0 0
        %1537 = vmatpush1.bf16.msra.mxu0 0
        %1538 = vmatprep.subr.bf16.mxu0 0
        %1539 = vmatpush1.bf16.msra.mxu0 0
        %1540 = vmatprep.subr.bf16.mxu0 0
        %1541 = vmatpush1.bf16.msra.mxu0 0
        %1542 = vmatprep.subr.bf16.mxu0 0
        %1543 = vmatpush1.bf16.msra.mxu0 0
        %1544 = vmatprep.subr.bf16.mxu0 0
        %1545 = vmatpush1.bf16.msra.mxu0 0
        %1546 = vmatprep.subr.bf16.mxu0 0
        %1547 = vmatpush1.bf16.msra.mxu0 0
        %1548 = vmatprep.subr.bf16.mxu0 0
        %1549 = vmatpush1.bf16.msra.mxu0 0
        %1550 = vmatprep.subr.bf16.mxu0 0
        %1551 = vmatpush1.bf16.msra.mxu0 0
        %1552 = vmatprep.subr.bf16.mxu0 0
        %1553 = vmatpush1.bf16.msra.mxu0 0
        %1554 = vmatprep.subr.bf16.mxu0 0
        %1555 = vmatpush1.bf16.msra.mxu0 0
        %1556 = vmatprep.subr.bf16.mxu0 0
        %1557 = vmatpush1.bf16.msra.mxu0 0
        %1558 = vmatprep.mubr.bf16.mxu0 0
        %1559 = vmatmul.mubr.bf16.gmra.mrb[0].mxu0 %v1521
        %v1560 = vpop.f32.mrb[0].mxu0
        %v1561 = vadd.f32 0.0, %v1560
        %v1562 = vpop.f32.mrb[0].mxu0
        %v1563 = vpop.f32.mrb[0].mxu0
        %v1564 = vpop.f32.mrb[0].mxu0
        %1565 = vdwg.mxu0
        %v1566 = vsel %vm325, %v1423, 0.0
        %v1567 = vsel %vm325, %v1469, 0.0
        %v1568 = vadd.f32 %v1566, %v1567
        %v1569 = vsel %vm325, %v1515, 0.0
        %v1570 = vadd.f32 %v1568, %v1569
        %v1571 = vsel %vm325, %v1561, 0.0
        %v1572 = vadd.f32 %v1570, %v1571
        %v1573 = vld [vmem:[%s4] sm:$0x1]
        %v1575 = vlaneseq
        %v1576 = vshrl.u32 %v1575, 7
        %v1577 = vsub.s32 0, %v1576
        %v1578 = vrot.slane %v1573, %v1577
        %v1580 = vadd.f32 %v1572, %v1578
        %1581 = vst.msk [vmem:[%s250] sm:$0xff] %vm325, %v1580
        %s1582 = sand.u32 %s158, 1
        %s1583 = scalar_lea.sflag [#allocation3], %s1582
        %s1584 = sand.u32 %s158, 1
        %s1585 = smul.addr %s1584, 8
        %s1586 = scalar_lea.vmem [#allocation2], %s1585
        // Predicated region
        $region41: #{tpu_custom_call.1} parent=39 // pred_check
          %p1587 = pneg %p168
        $region42: #{tpu_custom_call.1} parent=39 // pred_check_branch
          %1589 = sbr.rel (%p1587) target = $region44
        $region43: #{tpu_custom_call.1} parent=39 // pred_region
          %s1591 = ssub.s32 128, 128
          %1592 = vsyncadd %s1583, %s1591
          %s1593 = sadd.s32 %s24, %s23
          %s1594 = smul.addr %s1593, 128
          %s1595 = scalar_lea.hbm %s5, %s1594
          %s1597 = sshll.u32 %s1586, 4
          %s1598 = int_to_ptr.vmem [resolvable:$true] %s1597
          %1600 = dma.vmem_to_hbm [thread:$0]  %s1598, 128, %s1595, %s1583
        $region44: #{tpu_custom_call.1} parent=39 // pred_fallthru
          _
      $region40: #{tpu_custom_call.1} parent=5 // pred_fallthru
        _
      %p1601 = scmp.le.s32.totalorder 2, %s14
      // Predicated region
      $region45: #{tpu_custom_call.1} parent=5 // pred_check
        %p1602 = pneg %p1601
      $region46: #{tpu_custom_call.1} parent=5 // pred_check_branch
        %1604 = sbr.rel (%p1602) target = $region48
      $region47: #{tpu_custom_call.1} parent=5 // pred_region
        %s1605 = ssub.s32 %s14, 2
        // Predicated region
        $region49: #{tpu_custom_call.1} parent=47 // pred_check
          %p1606 = pneg %p174
        $region50: #{tpu_custom_call.1} parent=47 // pred_check_branch
          %1608 = sbr.rel (%p1606) target = $region52
        $region51: #{tpu_custom_call.1} parent=47 // pred_region
          %s1609 = sand.u32 %s159, 1
          %s1610 = scalar_lea.sflag [#allocation3], %s1609
          %s1611 = sand.u32 %s159, 1
          %s1612 = smul.addr %s1611, 8
          %s1613 = scalar_lea.vmem [#allocation2], %s1612
          %1614 = dma.done %s1610, 128
        $region52: #{tpu_custom_call.1} parent=47 // pred_fallthru
          _
      $region48: #{tpu_custom_call.1} parent=5 // pred_fallthru
        _
    $region6: #{tpu_custom_call.1} parent=1 // loop_footer
      %s18 = sadd.s32 1, %s14
    $region7: #{tpu_custom_call.1} parent=1 // loop_footer_branch
      %13 = sbr.rel target = $region3
    $region8: #{tpu_custom_call.1} parent=1 // loop_exit
      _
    %1615 = vsyncpa [#allocation3], 1
    %s1616 = scalar_lea.sflag [#allocation3], 1
    %1617 = vsyncpa %s1616, 1

</llo_original>
